<compile_context>
chip_gen: v5e
topology: v5e:2x2
jax: 0.10.0
libtpu: 0.0.40
codegen_flags: <defaults>
</compile_context>

<pallas_src>
import jax
import jax.numpy as jnp
from jax.experimental import pallas as pl
from jax.experimental.pallas import tpu as pltpu

NUM_HEADS = 8
HIDDEN = 256


def attention_fusion_kernel(x_ref, seg_ref, segt_ref, w_in_ref, b_in_ref,
                            wo_ref, bo_ref, w1_ref, b1_ref, w2_ref, b2_ref,
                            out_ref):
    L, TB, E = x_ref.shape                       # (3, TB, E): rows [text, image, sensor]
    H = seg_ref.shape[-1]
    Dh = E // H
    scale = 1.0 / float(Dh) ** 0.5

    x = x_ref[...]                               # (3, TB, E) bf16
    x2 = x.reshape(L * TB, E)                    # layout-clean collapse (TB % 8 == 0)

    # --- fused q/k/v in-projection: one (3*TB, E) x (E, 3E) matmul, f32 acc ---
    qkv = jnp.dot(x2, w_in_ref[...], preferred_element_type=jnp.float32) + b_in_ref[...]
    q = (qkv[:, :E] * scale).reshape(L, TB, E)   # f32
    k = qkv[:, E:2 * E].reshape(L, TB, E)
    v = qkv[:, 2 * E:].reshape(L, TB, E)

    seg = seg_ref[...]                           # (E, H) bf16 one-hot head membership
    segt = segt_ref[...]                         # (H, E) bf16

    # --- all-heads attention, unrolled over the 3 queries (f32 softmax math) ---
    head_rows = []
    for i in range(L):
        prod = q[i][None] * k                    # (3, TB, E) f32
        s = jnp.dot(prod.reshape(L * TB, E).astype(jnp.bfloat16), seg,
                    preferred_element_type=jnp.float32).reshape(L, TB, H)
        m = jnp.max(s, axis=0, keepdims=True)
        p = jnp.exp(s - m)
        p = p * pl.reciprocal(jnp.sum(p, axis=0, keepdims=True), approx=True)
        p_full = jnp.dot(p.reshape(L * TB, H).astype(jnp.bfloat16), segt,
                         preferred_element_type=jnp.float32).reshape(L, TB, E)
        head_rows.append(jnp.sum(p_full * v, axis=0))       # (TB, E)
    heads = jnp.concatenate(head_rows, axis=0)               # (3*TB, E) f32

    # --- output projection (pre-transposed Wo), one (3*TB, E) x (E, E) matmul ---
    attended = (jnp.dot(heads.astype(jnp.bfloat16), wo_ref[...],
                        preferred_element_type=jnp.float32)
                + bo_ref[...]).reshape(L, TB, E)

    # --- weight_net: Linear(3E,256) -> ReLU -> Linear(256,3) -> Softmax ---
    # concat-free: c @ W1^T == sum_l x[l] @ W1^T[l*E:(l+1)*E]
    h1 = jnp.dot(x[0], w1_ref[0], preferred_element_type=jnp.float32)
    for l in range(1, L):
        h1 = h1 + jnp.dot(x[l], w1_ref[l], preferred_element_type=jnp.float32)
    h1 = jnp.maximum(h1 + b1_ref[...], 0.0)                  # (TB, 256)
    logits = jnp.dot(h1.astype(jnp.bfloat16), w2_ref[...],
                     preferred_element_type=jnp.float32) + b2_ref[...]   # (TB, 3)
    logits = logits - jnp.max(logits, axis=-1, keepdims=True)
    e = jnp.exp(logits)
    w = e / jnp.sum(e, axis=-1, keepdims=True)               # exact divide (tiny softmax)

    # --- weighted modality sum: VPU multiply-accumulate over the 3 rows ---
    out = w[:, 0:1] * attended[0]
    for l in range(1, L):
        out = out + w[:, l:l + 1] * attended[l]
    out_ref[...] = out                                       # (TB, E), lane/sublane-dense


def init_params(key, embedding_dim):
    """Deterministic synthetic parameters (PyTorch weight layout, f32)."""
    ks = jax.random.split(key, 6)

    def lin(k, out_f, in_f, scale=0.05):
        kw, kb = jax.random.split(k)
        w = jax.random.normal(kw, (out_f, in_f), jnp.float32) * scale
        b = jax.random.normal(kb, (1, out_f), jnp.float32) * scale
        return w, b

    E = embedding_dim
    wq, bq = lin(ks[0], E, E)
    wk, bk = lin(ks[1], E, E)
    wv, bv = lin(ks[2], E, E)
    wo, bo = lin(ks[3], E, E)
    w1, b1 = lin(ks[4], HIDDEN, 3 * E)
    w2, b2 = lin(ks[5], 3, HIDDEN)
    return dict(wq=wq, bq=bq, wk=wk, bk=bk, wv=wv, bv=bv,
                wo=wo, bo=bo, w1=w1, b1=b1, w2=w2, b2=b2)


def _pack_params(p, E):
    """Pre-transpose / fuse / cast weights and build the one-hot head matrices."""
    H, Dh = NUM_HEADS, E // NUM_HEADS
    w_in = jnp.concatenate([p["wq"], p["wk"], p["wv"]], axis=0).T.astype(jnp.bfloat16)  # (E, 3E)
    b_in = jnp.concatenate([p["bq"], p["bk"], p["bv"]], axis=-1).astype(jnp.float32)    # (1, 3E)
    wo_t = p["wo"].T.astype(jnp.bfloat16)                                               # (E, E)
    w1_t = p["w1"].T.reshape(3, E, HIDDEN).astype(jnp.bfloat16)                         # (3, E, 256)
    w2_t = p["w2"].T.astype(jnp.bfloat16)                                               # (256, 3)
    head_of = jnp.arange(E, dtype=jnp.int32) // Dh
    seg = (head_of[:, None] == jnp.arange(H, dtype=jnp.int32)[None, :]).astype(jnp.bfloat16)  # (E, H)
    seg_t = seg.T                                                                       # (H, E)
    return (seg, seg_t, w_in, b_in, wo_t, p["bo"].astype(jnp.float32),
            w1_t, p["b1"].astype(jnp.float32), w2_t, p["b2"].astype(jnp.float32))


def _vmem_limit_bytes(E, tb):
    """Shape-derived VMEM budget (single-buffered weights + pipelined tiles + headroom)."""
    bf2, f4 = 2, 4
    weights = (E * 3 * E + E * E + 3 * E * HIDDEN + HIDDEN * 3 + 2 * E * NUM_HEADS) * bf2
    biases = (3 * E + E + HIDDEN + 3) * f4
    x_tiles = 2 * 3 * tb * E * bf2
    out_tiles = 2 * tb * E * f4
    act = 16 * 3 * tb * E * f4          # in-kernel temporaries (qkv, q/k/v, heads, ...)
    est = weights + biases + x_tiles + out_tiles + act
    return int(min(max(4 * est, 32 << 20), 100 << 20))


def attention_fusion(text_emb, image_emb, sensor_emb, p, *, tb=None):
    squeeze = text_emb.ndim == 1
    if squeeze:
        text_emb, image_emb, sensor_emb = (text_emb[None], image_emb[None], sensor_emb[None])
    B, E = text_emb.shape
    assert E % NUM_HEADS == 0

    if tb is None:
        # multiple of 8 (sublane-dense), <=128, and <= ~B/2 so the grid has
        # length >= 2 (keeps both v7x TensorCores busy) once B is large enough.
        tb = max(8, min(128, pl.next_power_of_2(max(B // 2, 1))))
    b_pad = pl.cdiv(B, tb) * tb

    x = jnp.stack([text_emb, image_emb, sensor_emb], axis=0).astype(jnp.bfloat16)  # (3, B, E)
    if b_pad != B:
        x = jnp.pad(x, ((0, 0), (0, b_pad - B), (0, 0)))

    packed = _pack_params(p, E)

    def const(shape):
        # grid-invariant input: constant index_map, single-buffered (fetched once)
        return pl.BlockSpec(shape, lambda b: (0,) * len(shape),
                            pipeline_mode=pl.Buffered(1))

    out = pl.pallas_call(
        attention_fusion_kernel,
        out_shape=jax.ShapeDtypeStruct((b_pad, E), jnp.float32),
        grid=(b_pad // tb,),
        in_specs=[
            pl.BlockSpec((3, tb, E), lambda b: (0, b, 0)),   # x: TB instances per step
            const((E, NUM_HEADS)),                           # seg   (one-hot head membership)
            const((NUM_HEADS, E)),                           # seg^T
            const((E, 3 * E)),                               # packed W_in = [Wq|Wk|Wv]^T
            const((1, 3 * E)),                               # packed b_in
            const((E, E)),                                   # Wo^T
            const((1, E)),                                   # bo
            const((3, E, HIDDEN)),                           # W1^T viewed as (3, E, 256)
            const((1, HIDDEN)),                              # b1
            const((HIDDEN, 3)),                              # W2^T
            const((1, 3)),                                   # b2
        ],
        out_specs=pl.BlockSpec((tb, E), lambda b: (b, 0)),   # 2-D lane/sublane-dense output
        compiler_params=pltpu.CompilerParams(
            dimension_semantics=("parallel",),
            vmem_limit_bytes=_vmem_limit_bytes(E, tb)),
    )(x, *packed)
    out = out[:B]
    return out[0] if squeeze else out


def reference(text_emb, image_emb, sensor_emb, p):
    """Pure-JAX f32 reference mirroring eval-mode nn.MultiheadAttention + weight_net."""
    E = text_emb.shape[-1]
    H, Dh = NUM_HEADS, E // NUM_HEADS
    x = jnp.stack([text_emb, image_emb, sensor_emb], axis=0)
    q = (x @ p["wq"].T + p["bq"][0]).reshape(3, H, Dh).transpose(1, 0, 2) / jnp.sqrt(float(Dh))
    k = (x @ p["wk"].T + p["bk"][0]).reshape(3, H, Dh).transpose(1, 0, 2)
    v = (x @ p["wv"].T + p["bv"][0]).reshape(3, H, Dh).transpose(1, 0, 2)
    s = jnp.einsum('hld,hmd->hlm', q, k)
    a = jax.nn.softmax(s, axis=-1)
    o = jnp.einsum('hlm,hmd->hld', a, v).transpose(1, 0, 2).reshape(3, E)
    attended = o @ p["wo"].T + p["bo"][0]
    c = jnp.concatenate([text_emb, image_emb, sensor_emb], axis=-1)
    h1 = jax.nn.relu(c @ p["w1"].T + p["b1"][0])
    w = jax.nn.softmax(h1 @ p["w2"].T + p["b2"][0], axis=-1)          # (3,)
    return (attended * w[:, None]).sum(axis=0)


if __name__ == "__main__":
    E = 32   # embedding_dim (must be divisible by num_heads=8)
    B = 16   # batch of independent fusion instances (grid length 2 with TB=8)
    key = jax.random.PRNGKey(0)
    kp, kt, ki, ks = jax.random.split(key, 4)
    params = init_params(kp, E)
    text_emb = jax.random.normal(kt, (B, E), jnp.float32)
    image_emb = jax.random.normal(ki, (B, E), jnp.float32)
    sensor_emb = jax.random.normal(ks, (B, E), jnp.float32)

    out = attention_fusion(text_emb, image_emb, sensor_emb, params)
    jax.block_until_ready(out)

    ref = jax.vmap(lambda t, i, s: reference(t, i, s, params))(text_emb, image_emb, sensor_emb)
    assert out.shape == (B, E), out.shape
    assert jnp.allclose(out, ref, rtol=2e-2, atol=2e-2), (out, ref)
    print("KERNEL_OK")
</pallas_src>

<mosaic_0001>
module attributes {stable_mosaic.version = 11 : i64} {
  func.func @attention_fusion_kernel(%arg0: i32, %arg1: memref<3x8x32xbf16, #tpu.memory_space<vmem>>, %arg2: memref<32x8xbf16, #tpu.memory_space<vmem>>, %arg3: memref<8x32xbf16, #tpu.memory_space<vmem>>, %arg4: memref<32x96xbf16, #tpu.memory_space<vmem>>, %arg5: memref<1x96xf32, #tpu.memory_space<vmem>>, %arg6: memref<32x32xbf16, #tpu.memory_space<vmem>>, %arg7: memref<1x32xf32, #tpu.memory_space<vmem>>, %arg8: memref<3x32x256xbf16, #tpu.memory_space<vmem>>, %arg9: memref<1x256xf32, #tpu.memory_space<vmem>>, %arg10: memref<256x3xbf16, #tpu.memory_space<vmem>>, %arg11: memref<1x3xf32, #tpu.memory_space<vmem>>, %arg12: memref<8x32xf32, #tpu.memory_space<vmem>>) attributes {dimension_semantics = [#tpu.dimension_semantics<parallel>], iteration_bounds = array<i64: 2>, scalar_prefetch = 0 : i64, scratch_operands = 0 : i64, tpu.core_type = #tpu.core_type<tc>, window_params = [{transform_indices = @transform_0, window_bounds = array<i64: 3, 8, 32>}, {pipeline_mode = #tpu.pipeline_mode<synchronous>, transform_indices = @transform_1, window_bounds = array<i64: 32, 8>}, {pipeline_mode = #tpu.pipeline_mode<synchronous>, transform_indices = @transform_2, window_bounds = array<i64: 8, 32>}, {pipeline_mode = #tpu.pipeline_mode<synchronous>, transform_indices = @transform_3, window_bounds = array<i64: 32, 96>}, {pipeline_mode = #tpu.pipeline_mode<synchronous>, transform_indices = @transform_4, window_bounds = array<i64: 1, 96>}, {pipeline_mode = #tpu.pipeline_mode<synchronous>, transform_indices = @transform_5, window_bounds = array<i64: 32, 32>}, {pipeline_mode = #tpu.pipeline_mode<synchronous>, transform_indices = @transform_6, window_bounds = array<i64: 1, 32>}, {pipeline_mode = #tpu.pipeline_mode<synchronous>, transform_indices = @transform_7, window_bounds = array<i64: 3, 32, 256>}, {pipeline_mode = #tpu.pipeline_mode<synchronous>, transform_indices = @transform_8, window_bounds = array<i64: 1, 256>}, {pipeline_mode = #tpu.pipeline_mode<synchronous>, transform_indices = @transform_9, window_bounds = array<i64: 256, 3>}, {pipeline_mode = #tpu.pipeline_mode<synchronous>, transform_indices = @transform_10, window_bounds = array<i64: 1, 3>}, {transform_indices = @transform_11, window_bounds = array<i64: 8, 32>}]} {
    %c0 = arith.constant 0 : index
    %c0_0 = arith.constant 0 : index
    %c0_1 = arith.constant 0 : index
    %0 = vector.load %arg1[%c0, %c0_0, %c0_1] : memref<3x8x32xbf16, #tpu.memory_space<vmem>>, vector<3x8x32xbf16>
    %1 = vector.shape_cast %0 : vector<3x8x32xbf16> to vector<24x32xbf16>
    %c0_2 = arith.constant 0 : index
    %c0_3 = arith.constant 0 : index
    %2 = vector.load %arg4[%c0_2, %c0_3] : memref<32x96xbf16, #tpu.memory_space<vmem>>, vector<32x96xbf16>
    %cst = arith.constant dense<0.000000e+00> : vector<24x96xf32>
    %3 = tpu.matmul %1, %2, %cst {dimension_numbers = #tpu.dot_dimension_numbers<[1], [0], [0], [1], [0, 0, 1, 1], [], []>} : vector<24x32xbf16>, vector<32x96xbf16>, vector<24x96xf32> -> vector<24x96xf32>
    %c0_4 = arith.constant 0 : index
    %c0_5 = arith.constant 0 : index
    %4 = vector.load %arg5[%c0_4, %c0_5] : memref<1x96xf32, #tpu.memory_space<vmem>>, vector<1x96xf32>
    %5 = vector.broadcast %4 : vector<1x96xf32> to vector<24x96xf32>
    %6 = arith.addf %3, %5 : vector<24x96xf32>
    %7 = vector.extract_strided_slice %6 {offsets = [0, 0], sizes = [24, 32], strides = [1, 1]} : vector<24x96xf32> to vector<24x32xf32>
    %cst_6 = arith.constant 5.000000e-01 : f32
    %8 = vector.broadcast %cst_6 : f32 to vector<24x32xf32>
    %9 = arith.mulf %7, %8 : vector<24x32xf32>
    %10 = vector.shape_cast %9 : vector<24x32xf32> to vector<3x8x32xf32>
    %11 = vector.extract_strided_slice %6 {offsets = [0, 32], sizes = [24, 32], strides = [1, 1]} : vector<24x96xf32> to vector<24x32xf32>
    %12 = vector.shape_cast %11 : vector<24x32xf32> to vector<3x8x32xf32>
    %13 = vector.extract_strided_slice %6 {offsets = [0, 64], sizes = [24, 32], strides = [1, 1]} : vector<24x96xf32> to vector<24x32xf32>
    %14 = vector.shape_cast %13 : vector<24x32xf32> to vector<3x8x32xf32>
    %c0_7 = arith.constant 0 : index
    %c0_8 = arith.constant 0 : index
    %15 = vector.load %arg2[%c0_7, %c0_8] : memref<32x8xbf16, #tpu.memory_space<vmem>>, vector<32x8xbf16>
    %c0_9 = arith.constant 0 : index
    %c0_10 = arith.constant 0 : index
    %16 = vector.load %arg3[%c0_9, %c0_10] : memref<8x32xbf16, #tpu.memory_space<vmem>>, vector<8x32xbf16>
    %17 = vector.extract_strided_slice %10 {offsets = [0, 0, 0], sizes = [1, 8, 32], strides = [1, 1, 1]} : vector<3x8x32xf32> to vector<1x8x32xf32>
    %18 = vector.shape_cast %17 : vector<1x8x32xf32> to vector<8x32xf32>
    %19 = vector.shape_cast %18 : vector<8x32xf32> to vector<1x8x32xf32>
    %20 = vector.broadcast %19 : vector<1x8x32xf32> to vector<3x8x32xf32>
    %21 = arith.mulf %20, %12 : vector<3x8x32xf32>
    %22 = vector.shape_cast %21 : vector<3x8x32xf32> to vector<24x32xf32>
    %23 = arith.truncf %22 : vector<24x32xf32> to vector<24x32xbf16>
    %cst_11 = arith.constant dense<0.000000e+00> : vector<24x8xf32>
    %24 = tpu.matmul %23, %15, %cst_11 {dimension_numbers = #tpu.dot_dimension_numbers<[1], [0], [0], [1], [0, 0, 1, 1], [], []>} : vector<24x32xbf16>, vector<32x8xbf16>, vector<24x8xf32> -> vector<24x8xf32>
    %25 = vector.shape_cast %24 : vector<24x8xf32> to vector<3x8x8xf32>
    %cst_12 = arith.constant dense<0xFF800000> : vector<8x8xf32>
    %26 = vector.multi_reduction <maximumf>, %25, %cst_12 [0] : vector<3x8x8xf32> to vector<8x8xf32>
    %27 = vector.shape_cast %26 : vector<8x8xf32> to vector<1x8x8xf32>
    %28 = vector.broadcast %27 : vector<1x8x8xf32> to vector<3x8x8xf32>
    %29 = arith.subf %25, %28 : vector<3x8x8xf32>
    %30 = math.exp %29 : vector<3x8x8xf32>
    %cst_13 = arith.constant dense<0.000000e+00> : vector<8x8xf32>
    %31 = vector.multi_reduction <add>, %30, %cst_13 [0] : vector<3x8x8xf32> to vector<8x8xf32>
    %32 = vector.shape_cast %31 : vector<8x8xf32> to vector<1x8x8xf32>
    %33 = tpu.reciprocal %32 {approx = true} : vector<1x8x8xf32> -> vector<1x8x8xf32>
    %34 = vector.broadcast %33 : vector<1x8x8xf32> to vector<3x8x8xf32>
    %35 = arith.mulf %30, %34 : vector<3x8x8xf32>
    %36 = vector.shape_cast %35 : vector<3x8x8xf32> to vector<24x8xf32>
    %37 = arith.truncf %36 : vector<24x8xf32> to vector<24x8xbf16>
    %cst_14 = arith.constant dense<0.000000e+00> : vector<24x32xf32>
    %38 = tpu.matmul %37, %16, %cst_14 {dimension_numbers = #tpu.dot_dimension_numbers<[1], [0], [0], [1], [0, 0, 1, 1], [], []>} : vector<24x8xbf16>, vector<8x32xbf16>, vector<24x32xf32> -> vector<24x32xf32>
    %39 = vector.shape_cast %38 : vector<24x32xf32> to vector<3x8x32xf32>
    %40 = arith.mulf %39, %14 : vector<3x8x32xf32>
    %cst_15 = arith.constant dense<0.000000e+00> : vector<8x32xf32>
    %41 = vector.multi_reduction <add>, %40, %cst_15 [0] : vector<3x8x32xf32> to vector<8x32xf32>
    %42 = vector.extract_strided_slice %10 {offsets = [1, 0, 0], sizes = [1, 8, 32], strides = [1, 1, 1]} : vector<3x8x32xf32> to vector<1x8x32xf32>
    %43 = vector.shape_cast %42 : vector<1x8x32xf32> to vector<8x32xf32>
    %44 = vector.shape_cast %43 : vector<8x32xf32> to vector<1x8x32xf32>
    %45 = vector.broadcast %44 : vector<1x8x32xf32> to vector<3x8x32xf32>
    %46 = arith.mulf %45, %12 : vector<3x8x32xf32>
    %47 = vector.shape_cast %46 : vector<3x8x32xf32> to vector<24x32xf32>
    %48 = arith.truncf %47 : vector<24x32xf32> to vector<24x32xbf16>
    %cst_16 = arith.constant dense<0.000000e+00> : vector<24x8xf32>
    %49 = tpu.matmul %48, %15, %cst_16 {dimension_numbers = #tpu.dot_dimension_numbers<[1], [0], [0], [1], [0, 0, 1, 1], [], []>} : vector<24x32xbf16>, vector<32x8xbf16>, vector<24x8xf32> -> vector<24x8xf32>
    %50 = vector.shape_cast %49 : vector<24x8xf32> to vector<3x8x8xf32>
    %cst_17 = arith.constant dense<0xFF800000> : vector<8x8xf32>
    %51 = vector.multi_reduction <maximumf>, %50, %cst_17 [0] : vector<3x8x8xf32> to vector<8x8xf32>
    %52 = vector.shape_cast %51 : vector<8x8xf32> to vector<1x8x8xf32>
    %53 = vector.broadcast %52 : vector<1x8x8xf32> to vector<3x8x8xf32>
    %54 = arith.subf %50, %53 : vector<3x8x8xf32>
    %55 = math.exp %54 : vector<3x8x8xf32>
    %cst_18 = arith.constant dense<0.000000e+00> : vector<8x8xf32>
    %56 = vector.multi_reduction <add>, %55, %cst_18 [0] : vector<3x8x8xf32> to vector<8x8xf32>
    %57 = vector.shape_cast %56 : vector<8x8xf32> to vector<1x8x8xf32>
    %58 = tpu.reciprocal %57 {approx = true} : vector<1x8x8xf32> -> vector<1x8x8xf32>
    %59 = vector.broadcast %58 : vector<1x8x8xf32> to vector<3x8x8xf32>
    %60 = arith.mulf %55, %59 : vector<3x8x8xf32>
    %61 = vector.shape_cast %60 : vector<3x8x8xf32> to vector<24x8xf32>
    %62 = arith.truncf %61 : vector<24x8xf32> to vector<24x8xbf16>
    %cst_19 = arith.constant dense<0.000000e+00> : vector<24x32xf32>
    %63 = tpu.matmul %62, %16, %cst_19 {dimension_numbers = #tpu.dot_dimension_numbers<[1], [0], [0], [1], [0, 0, 1, 1], [], []>} : vector<24x8xbf16>, vector<8x32xbf16>, vector<24x32xf32> -> vector<24x32xf32>
    %64 = vector.shape_cast %63 : vector<24x32xf32> to vector<3x8x32xf32>
    %65 = arith.mulf %64, %14 : vector<3x8x32xf32>
    %cst_20 = arith.constant dense<0.000000e+00> : vector<8x32xf32>
    %66 = vector.multi_reduction <add>, %65, %cst_20 [0] : vector<3x8x32xf32> to vector<8x32xf32>
    %67 = vector.extract_strided_slice %10 {offsets = [2, 0, 0], sizes = [1, 8, 32], strides = [1, 1, 1]} : vector<3x8x32xf32> to vector<1x8x32xf32>
    %68 = vector.shape_cast %67 : vector<1x8x32xf32> to vector<8x32xf32>
    %69 = vector.shape_cast %68 : vector<8x32xf32> to vector<1x8x32xf32>
    %70 = vector.broadcast %69 : vector<1x8x32xf32> to vector<3x8x32xf32>
    %71 = arith.mulf %70, %12 : vector<3x8x32xf32>
    %72 = vector.shape_cast %71 : vector<3x8x32xf32> to vector<24x32xf32>
    %73 = arith.truncf %72 : vector<24x32xf32> to vector<24x32xbf16>
    %cst_21 = arith.constant dense<0.000000e+00> : vector<24x8xf32>
    %74 = tpu.matmul %73, %15, %cst_21 {dimension_numbers = #tpu.dot_dimension_numbers<[1], [0], [0], [1], [0, 0, 1, 1], [], []>} : vector<24x32xbf16>, vector<32x8xbf16>, vector<24x8xf32> -> vector<24x8xf32>
    %75 = vector.shape_cast %74 : vector<24x8xf32> to vector<3x8x8xf32>
    %cst_22 = arith.constant dense<0xFF800000> : vector<8x8xf32>
    %76 = vector.multi_reduction <maximumf>, %75, %cst_22 [0] : vector<3x8x8xf32> to vector<8x8xf32>
    %77 = vector.shape_cast %76 : vector<8x8xf32> to vector<1x8x8xf32>
    %78 = vector.broadcast %77 : vector<1x8x8xf32> to vector<3x8x8xf32>
    %79 = arith.subf %75, %78 : vector<3x8x8xf32>
    %80 = math.exp %79 : vector<3x8x8xf32>
    %cst_23 = arith.constant dense<0.000000e+00> : vector<8x8xf32>
    %81 = vector.multi_reduction <add>, %80, %cst_23 [0] : vector<3x8x8xf32> to vector<8x8xf32>
    %82 = vector.shape_cast %81 : vector<8x8xf32> to vector<1x8x8xf32>
    %83 = tpu.reciprocal %82 {approx = true} : vector<1x8x8xf32> -> vector<1x8x8xf32>
    %84 = vector.broadcast %83 : vector<1x8x8xf32> to vector<3x8x8xf32>
    %85 = arith.mulf %80, %84 : vector<3x8x8xf32>
    %86 = vector.shape_cast %85 : vector<3x8x8xf32> to vector<24x8xf32>
    %87 = arith.truncf %86 : vector<24x8xf32> to vector<24x8xbf16>
    %cst_24 = arith.constant dense<0.000000e+00> : vector<24x32xf32>
    %88 = tpu.matmul %87, %16, %cst_24 {dimension_numbers = #tpu.dot_dimension_numbers<[1], [0], [0], [1], [0, 0, 1, 1], [], []>} : vector<24x8xbf16>, vector<8x32xbf16>, vector<24x32xf32> -> vector<24x32xf32>
    %89 = vector.shape_cast %88 : vector<24x32xf32> to vector<3x8x32xf32>
    %90 = arith.mulf %89, %14 : vector<3x8x32xf32>
    %cst_25 = arith.constant dense<0.000000e+00> : vector<8x32xf32>
    %91 = vector.multi_reduction <add>, %90, %cst_25 [0] : vector<3x8x32xf32> to vector<8x32xf32>
    %92 = tpu.concatenate %41, %66, %91 in 0 : vector<8x32xf32>, vector<8x32xf32>, vector<8x32xf32> -> vector<24x32xf32>
    %93 = arith.truncf %92 : vector<24x32xf32> to vector<24x32xbf16>
    %c0_26 = arith.constant 0 : index
    %c0_27 = arith.constant 0 : index
    %94 = vector.load %arg6[%c0_26, %c0_27] : memref<32x32xbf16, #tpu.memory_space<vmem>>, vector<32x32xbf16>
    %cst_28 = arith.constant dense<0.000000e+00> : vector<24x32xf32>
    %95 = tpu.matmul %93, %94, %cst_28 {dimension_numbers = #tpu.dot_dimension_numbers<[1], [0], [0], [1], [0, 0, 1, 1], [], []>} : vector<24x32xbf16>, vector<32x32xbf16>, vector<24x32xf32> -> vector<24x32xf32>
    %c0_29 = arith.constant 0 : index
    %c0_30 = arith.constant 0 : index
    %96 = vector.load %arg7[%c0_29, %c0_30] : memref<1x32xf32, #tpu.memory_space<vmem>>, vector<1x32xf32>
    %97 = vector.broadcast %96 : vector<1x32xf32> to vector<24x32xf32>
    %98 = arith.addf %95, %97 : vector<24x32xf32>
    %99 = vector.shape_cast %98 : vector<24x32xf32> to vector<3x8x32xf32>
    %100 = vector.extract_strided_slice %0 {offsets = [0, 0, 0], sizes = [1, 8, 32], strides = [1, 1, 1]} : vector<3x8x32xbf16> to vector<1x8x32xbf16>
    %101 = vector.shape_cast %100 : vector<1x8x32xbf16> to vector<8x32xbf16>
    %c0_31 = arith.constant 0 : index
    %c0_32 = arith.constant 0 : index
    %c0_33 = arith.constant 0 : index
    %102 = vector.load %arg8[%c0_31, %c0_32, %c0_33] : memref<3x32x256xbf16, #tpu.memory_space<vmem>>, vector<1x32x256xbf16>
    %103 = vector.shape_cast %102 : vector<1x32x256xbf16> to vector<32x256xbf16>
    %cst_34 = arith.constant dense<0.000000e+00> : vector<8x256xf32>
    %104 = tpu.matmul %101, %103, %cst_34 {dimension_numbers = #tpu.dot_dimension_numbers<[1], [0], [0], [1], [0, 0, 1, 1], [], []>} : vector<8x32xbf16>, vector<32x256xbf16>, vector<8x256xf32> -> vector<8x256xf32>
    %105 = vector.extract_strided_slice %0 {offsets = [1, 0, 0], sizes = [1, 8, 32], strides = [1, 1, 1]} : vector<3x8x32xbf16> to vector<1x8x32xbf16>
    %106 = vector.shape_cast %105 : vector<1x8x32xbf16> to vector<8x32xbf16>
    %c1 = arith.constant 1 : index
    %c0_35 = arith.constant 0 : index
    %c0_36 = arith.constant 0 : index
    %107 = vector.load %arg8[%c1, %c0_35, %c0_36] : memref<3x32x256xbf16, #tpu.memory_space<vmem>>, vector<1x32x256xbf16>
    %108 = vector.shape_cast %107 : vector<1x32x256xbf16> to vector<32x256xbf16>
    %cst_37 = arith.constant dense<0.000000e+00> : vector<8x256xf32>
    %109 = tpu.matmul %106, %108, %cst_37 {dimension_numbers = #tpu.dot_dimension_numbers<[1], [0], [0], [1], [0, 0, 1, 1], [], []>} : vector<8x32xbf16>, vector<32x256xbf16>, vector<8x256xf32> -> vector<8x256xf32>
    %110 = arith.addf %104, %109 : vector<8x256xf32>
    %111 = vector.extract_strided_slice %0 {offsets = [2, 0, 0], sizes = [1, 8, 32], strides = [1, 1, 1]} : vector<3x8x32xbf16> to vector<1x8x32xbf16>
    %112 = vector.shape_cast %111 : vector<1x8x32xbf16> to vector<8x32xbf16>
    %c2 = arith.constant 2 : index
    %c0_38 = arith.constant 0 : index
    %c0_39 = arith.constant 0 : index
    %113 = vector.load %arg8[%c2, %c0_38, %c0_39] : memref<3x32x256xbf16, #tpu.memory_space<vmem>>, vector<1x32x256xbf16>
    %114 = vector.shape_cast %113 : vector<1x32x256xbf16> to vector<32x256xbf16>
    %cst_40 = arith.constant dense<0.000000e+00> : vector<8x256xf32>
    %115 = tpu.matmul %112, %114, %cst_40 {dimension_numbers = #tpu.dot_dimension_numbers<[1], [0], [0], [1], [0, 0, 1, 1], [], []>} : vector<8x32xbf16>, vector<32x256xbf16>, vector<8x256xf32> -> vector<8x256xf32>
    %116 = arith.addf %110, %115 : vector<8x256xf32>
    %c0_41 = arith.constant 0 : index
    %c0_42 = arith.constant 0 : index
    %117 = vector.load %arg9[%c0_41, %c0_42] : memref<1x256xf32, #tpu.memory_space<vmem>>, vector<1x256xf32>
    %118 = vector.broadcast %117 : vector<1x256xf32> to vector<8x256xf32>
    %119 = arith.addf %116, %118 : vector<8x256xf32>
    %cst_43 = arith.constant 0.000000e+00 : f32
    %120 = vector.broadcast %cst_43 : f32 to vector<8x256xf32>
    %121 = arith.maximumf %119, %120 : vector<8x256xf32>
    %122 = arith.truncf %121 : vector<8x256xf32> to vector<8x256xbf16>
    %c0_44 = arith.constant 0 : index
    %c0_45 = arith.constant 0 : index
    %123 = vector.load %arg10[%c0_44, %c0_45] : memref<256x3xbf16, #tpu.memory_space<vmem>>, vector<256x3xbf16>
    %cst_46 = arith.constant dense<0.000000e+00> : vector<8x3xf32>
    %124 = tpu.matmul %122, %123, %cst_46 {dimension_numbers = #tpu.dot_dimension_numbers<[1], [0], [0], [1], [0, 0, 1, 1], [], []>} : vector<8x256xbf16>, vector<256x3xbf16>, vector<8x3xf32> -> vector<8x3xf32>
    %c0_47 = arith.constant 0 : index
    %c0_48 = arith.constant 0 : index
    %125 = vector.load %arg11[%c0_47, %c0_48] : memref<1x3xf32, #tpu.memory_space<vmem>>, vector<1x3xf32>
    %126 = vector.broadcast %125 : vector<1x3xf32> to vector<8x3xf32>
    %127 = arith.addf %124, %126 : vector<8x3xf32>
    %cst_49 = arith.constant dense<0xFF800000> : vector<8xf32>
    %128 = vector.multi_reduction <maximumf>, %127, %cst_49 [1] : vector<8x3xf32> to vector<8xf32>
    %129 = vector.shape_cast %128 : vector<8xf32> to vector<8x1xf32>
    %130 = vector.broadcast %129 : vector<8x1xf32> to vector<8x3xf32>
    %131 = arith.subf %127, %130 : vector<8x3xf32>
    %132 = math.exp %131 : vector<8x3xf32>
    %cst_50 = arith.constant dense<0.000000e+00> : vector<8xf32>
    %133 = vector.multi_reduction <add>, %132, %cst_50 [1] : vector<8x3xf32> to vector<8xf32>
    %134 = vector.shape_cast %133 : vector<8xf32> to vector<8x1xf32>
    %135 = vector.broadcast %134 : vector<8x1xf32> to vector<8x3xf32>
    %136 = arith.divf %132, %135 : vector<8x3xf32>
    %137 = vector.extract_strided_slice %136 {offsets = [0, 0], sizes = [8, 1], strides = [1, 1]} : vector<8x3xf32> to vector<8x1xf32>
    %138 = vector.extract_strided_slice %99 {offsets = [0, 0, 0], sizes = [1, 8, 32], strides = [1, 1, 1]} : vector<3x8x32xf32> to vector<1x8x32xf32>
    %139 = vector.shape_cast %138 : vector<1x8x32xf32> to vector<8x32xf32>
    %140 = vector.broadcast %137 : vector<8x1xf32> to vector<8x32xf32>
    %141 = arith.mulf %140, %139 : vector<8x32xf32>
    %142 = vector.extract_strided_slice %136 {offsets = [0, 1], sizes = [8, 1], strides = [1, 1]} : vector<8x3xf32> to vector<8x1xf32>
    %143 = vector.extract_strided_slice %99 {offsets = [1, 0, 0], sizes = [1, 8, 32], strides = [1, 1, 1]} : vector<3x8x32xf32> to vector<1x8x32xf32>
    %144 = vector.shape_cast %143 : vector<1x8x32xf32> to vector<8x32xf32>
    %145 = vector.broadcast %142 : vector<8x1xf32> to vector<8x32xf32>
    %146 = arith.mulf %145, %144 : vector<8x32xf32>
    %147 = arith.addf %141, %146 : vector<8x32xf32>
    %148 = vector.extract_strided_slice %136 {offsets = [0, 2], sizes = [8, 1], strides = [1, 1]} : vector<8x3xf32> to vector<8x1xf32>
    %149 = vector.extract_strided_slice %99 {offsets = [2, 0, 0], sizes = [1, 8, 32], strides = [1, 1, 1]} : vector<3x8x32xf32> to vector<1x8x32xf32>
    %150 = vector.shape_cast %149 : vector<1x8x32xf32> to vector<8x32xf32>
    %151 = vector.broadcast %148 : vector<8x1xf32> to vector<8x32xf32>
    %152 = arith.mulf %151, %150 : vector<8x32xf32>
    %153 = arith.addf %147, %152 : vector<8x32xf32>
    %c0_51 = arith.constant 0 : index
    %c0_52 = arith.constant 0 : index
    %154 = vector.load %arg12[%c0_51, %c0_52] : memref<8x32xf32, #tpu.memory_space<vmem>>, vector<8x32xf32>
    tpu.vector_store %arg12[%c0_51, %c0_52], %153 {strides = array<i32>} : memref<8x32xf32, #tpu.memory_space<vmem>>, vector<8x32xf32>,
    return
  }
  func.func @transform_0(%arg0: i32) -> (i32, i32, i32) {
    %c0_i32 = arith.constant 0 : i32
    %c0_i32_0 = arith.constant 0 : i32
    %c0_i32_1 = arith.constant 0 : i32
    return %c0_i32, %arg0, %c0_i32_0 : i32, i32, i32
  }
  func.func @transform_1(%arg0: i32) -> (i32, i32) {
    %c0_i32 = arith.constant 0 : i32
    %c0_i32_0 = arith.constant 0 : i32
    %c0_i32_1 = arith.constant 0 : i32
    return %c0_i32, %c0_i32_0 : i32, i32
  }
  func.func @transform_2(%arg0: i32) -> (i32, i32) {
    %c0_i32 = arith.constant 0 : i32
    %c0_i32_0 = arith.constant 0 : i32
    %c0_i32_1 = arith.constant 0 : i32
    return %c0_i32, %c0_i32_0 : i32, i32
  }
  func.func @transform_3(%arg0: i32) -> (i32, i32) {
    %c0_i32 = arith.constant 0 : i32
    %c0_i32_0 = arith.constant 0 : i32
    %c0_i32_1 = arith.constant 0 : i32
    return %c0_i32, %c0_i32_0 : i32, i32
  }
  func.func @transform_4(%arg0: i32) -> (i32, i32) {
    %c0_i32 = arith.constant 0 : i32
    %c0_i32_0 = arith.constant 0 : i32
    %c0_i32_1 = arith.constant 0 : i32
    return %c0_i32, %c0_i32_0 : i32, i32
  }
  func.func @transform_5(%arg0: i32) -> (i32, i32) {
    %c0_i32 = arith.constant 0 : i32
    %c0_i32_0 = arith.constant 0 : i32
    %c0_i32_1 = arith.constant 0 : i32
    return %c0_i32, %c0_i32_0 : i32, i32
  }
  func.func @transform_6(%arg0: i32) -> (i32, i32) {
    %c0_i32 = arith.constant 0 : i32
    %c0_i32_0 = arith.constant 0 : i32
    %c0_i32_1 = arith.constant 0 : i32
    return %c0_i32, %c0_i32_0 : i32, i32
  }
  func.func @transform_7(%arg0: i32) -> (i32, i32, i32) {
    %c0_i32 = arith.constant 0 : i32
    %c0_i32_0 = arith.constant 0 : i32
    %c0_i32_1 = arith.constant 0 : i32
    %c0_i32_2 = arith.constant 0 : i32
    return %c0_i32, %c0_i32_0, %c0_i32_1 : i32, i32, i32
  }
  func.func @transform_8(%arg0: i32) -> (i32, i32) {
    %c0_i32 = arith.constant 0 : i32
    %c0_i32_0 = arith.constant 0 : i32
    %c0_i32_1 = arith.constant 0 : i32
    return %c0_i32, %c0_i32_0 : i32, i32
  }
  func.func @transform_9(%arg0: i32) -> (i32, i32) {
    %c0_i32 = arith.constant 0 : i32
    %c0_i32_0 = arith.constant 0 : i32
    %c0_i32_1 = arith.constant 0 : i32
    return %c0_i32, %c0_i32_0 : i32, i32
  }
  func.func @transform_10(%arg0: i32) -> (i32, i32) {
    %c0_i32 = arith.constant 0 : i32
    %c0_i32_0 = arith.constant 0 : i32
    %c0_i32_1 = arith.constant 0 : i32
    return %c0_i32, %c0_i32_0 : i32, i32
  }
  func.func @transform_11(%arg0: i32) -> (i32, i32) {
    %c0_i32 = arith.constant 0 : i32
    %c0_i32_0 = arith.constant 0 : i32
    return %arg0, %c0_i32 : i32, i32
  }
}

</mosaic_0001>

<llo_original>
// kernel: tpu_custom_call.1
$region0: #{tpu_custom_call.1}
  #allocation0 [shape = 'u32[]', space=smem, size = 0x4, offset = 0x4, fixed_abs, tag = 'smem constant byte address 0x4 - core index']
  #allocation1 [shape = 'u32[72,128]{1,0:T(1,128)}', space=vmem, size = 0x9000, scoped, tag = 'internal scratch']
  %s0 = inlined_call_operand.vmem [shape: bf16[3,16,32], index: 0, kind: input, shape index: {}]
  %s1 = inlined_call_operand.vmem [shape: bf16[32,8], index: 1, kind: input, shape index: {}]
  %s2 = inlined_call_operand.vmem [shape: bf16[8,32], index: 2, kind: input, shape index: {}]
  %s3 = inlined_call_operand.vmem [shape: bf16[32,96], index: 3, kind: input, shape index: {}]
  %s4 = inlined_call_operand.vmem [shape: f32[1,96], index: 4, kind: input, shape index: {}]
  %s5 = inlined_call_operand.hbm [shape: bf16[32,32], index: 5, kind: input, shape index: {}]
  %s6 = inlined_call_operand.vmem [shape: f32[1,32], index: 6, kind: input, shape index: {}]
  %s7 = inlined_call_operand.vmem [shape: bf16[3,32,256], index: 7, kind: input, shape index: {}]
  %s8 = inlined_call_operand.vmem [shape: f32[1,256], index: 8, kind: input, shape index: {}]
  %s9 = inlined_call_operand.vmem [shape: bf16[256,3], index: 9, kind: input, shape index: {}]
  %s10 = inlined_call_operand.vmem [shape: f32[1,3], index: 10, kind: input, shape index: {}]
  %s11 = inlined_call_operand.hbm [shape: f32[16,32], index: 11, kind: output, shape index: {}]
  %s12 = sld [smem:[#allocation0]]
  $region122: #{tpu_custom_call.1} parent=0
    _
  %s14 = ssub.s32 1, %s12
  %s15 = scalar_select 0, %s14, %s12
  $region1: #{tpu_custom_call.1} parent=0
    #allocation2 [shape = 'u8[12288]{0}', space=vmem, size = 0x3000, scoped, tag = 'input window, operand 0']
    #allocation3 [shape = 'u8[8192]{0}', space=vmem, size = 0x2000, scoped, tag = 'input window, operand 5, single buffered']
    #allocation4 [shape = 's32[2]{0}', space=sflag, size = 0x8, scoped, tag = 'scoped memory for tpu_custom_call.1']
    #allocation5 [shape = 's32[2]{0}', space=sflag, size = 0x8, scoped, tag = 'scoped memory for tpu_custom_call.1']
    #allocation6 [shape = 'u8[8192]{0}', space=vmem, size = 0x2000, scoped, tag = 'output window, operand 0']
    %16 = vsyncpa [#allocation4], 0
    %17 = vsyncpa [#allocation5], 0
    %s18 = scalar_lea.sflag [#allocation5], 1
    %19 = vsyncpa %s18, 0
    loop: start=0, step=1, limit=4
    $region2: #{tpu_custom_call.1} parent=1 // loop_pre_header
      _
    $region3: #{tpu_custom_call.1} parent=1 // loop_header
      %s21 = sphi 0, %s25
      %p22 = scmp.ge.s32.totalorder %s21, 4
      %s31 = sphi 0, %s33
      %s34 = sphi 0, %s31
      %s35 = sphi 0, %s34
      %s51 = sphi 0, %s35
      %s55 = sphi 0, %s55
      %s57 = sphi 0, %s55
      %s58 = sphi 0, %s57
      %s72 = sphi 0, %s58
      %s76 = sphi 0, %s76
      %s78 = sphi 0, %s76
      %s79 = sphi 0, %s78
      %s93 = sphi 0, %s79
      %s97 = sphi 0, %s97
      %s99 = sphi 0, %s97
      %s100 = sphi 0, %s99
      %s114 = sphi 0, %s100
      %s118 = sphi 0, %s118
      %s120 = sphi 0, %s118
      %s121 = sphi 0, %s120
      %s135 = sphi 0, %s121
      %s139 = sphi 0, %s139
      %s141 = sphi 0, %s139
      %s142 = sphi 0, %s141
      %s156 = sphi 0, %s142
      %s160 = sphi 0, %s160
      %s162 = sphi 0, %s160
      %s163 = sphi 0, %s162
      %s177 = sphi 0, %s163
      %s181 = sphi 0, %s181
      %s183 = sphi 0, %s181
      %s184 = sphi 0, %s183
      %s198 = sphi 0, %s184
      %s202 = sphi 0, %s202
      %s204 = sphi 0, %s202
      %s205 = sphi 0, %s204
      %s219 = sphi 0, %s205
      %s223 = sphi 0, %s223
      %s225 = sphi 0, %s223
      %s226 = sphi 0, %s225
      %s240 = sphi 0, %s226
      %s244 = sphi 0, %s244
      %s246 = sphi 0, %s244
      %s247 = sphi 0, %s246
      %s261 = sphi 0, %s247
      %s267 = sphi 0, %s269
      %s270 = sphi 0, %s267
      %s271 = sphi 0, %s270
      %s287 = sphi 0, %s271
    $region4: #{tpu_custom_call.1} parent=1 // loop_header_branch
      %24 = sbr.rel (%p22) target = $region8
    $region5: #{tpu_custom_call.1} parent=1 // loop_body
      %s26 = ssub.s32 %s21, 1
      %s27 = ssub.s32 %s21, 2
      %s28 = sadd.s32 %s21, 1
      %s29 = ssub.s32 %s21, %s28
      %p30 = scmp.eq.s32.totalorder %s29, 0
      %s32 = sadd.s32 %s31, 1
      %s33 = scalar_select %p30, %s31, %s32
      %p36 = pneg %p30
      %p37 = scmp.eq.s32.totalorder %s21, 1
      %p38 = por %p36, %p37
      %p39 = scmp.ne.s32.totalorder %s31, %s34
      %p40 = scmp.eq.s32.totalorder %s21, 0
      %p41 = por %p39, %p40
      %p42 = scmp.ne.s32.totalorder %s31, %s34
      %p43 = scmp.eq.s32.totalorder %s26, 1
      %p44 = por %p42, %p43
      %p45 = scmp.ne.s32.totalorder %s34, %s35
      %p46 = scmp.eq.s32.totalorder %s26, 0
      %p47 = por %p45, %p46
      %p48 = scmp.ne.s32.totalorder %s34, %s35
      %p49 = scmp.eq.s32.totalorder %s27, 1
      %p50 = por %p48, %p49
      %p52 = scmp.ne.s32.totalorder %s35, %s51
      %p53 = scmp.eq.s32.totalorder %s27, 0
      %p54 = por %p52, %p53
      %s56 = sadd.s32 %s55, 1
      %p59 = scmp.eq.s32.totalorder %s21, 1
      %p60 = scmp.ne.s32.totalorder %s55, %s57
      %p61 = scmp.eq.s32.totalorder %s21, 0
      %p62 = por %p60, %p61
      %p63 = scmp.ne.s32.totalorder %s55, %s57
      %p64 = scmp.eq.s32.totalorder %s26, 1
      %p65 = por %p63, %p64
      %p66 = scmp.ne.s32.totalorder %s57, %s58
      %p67 = scmp.eq.s32.totalorder %s26, 0
      %p68 = por %p66, %p67
      %p69 = scmp.ne.s32.totalorder %s57, %s58
      %p70 = scmp.eq.s32.totalorder %s27, 1
      %p71 = por %p69, %p70
      %p73 = scmp.ne.s32.totalorder %s58, %s72
      %p74 = scmp.eq.s32.totalorder %s27, 0
      %p75 = por %p73, %p74
      %s77 = sadd.s32 %s76, 1
      %p80 = scmp.eq.s32.totalorder %s21, 1
      %p81 = scmp.ne.s32.totalorder %s76, %s78
      %p82 = scmp.eq.s32.totalorder %s21, 0
      %p83 = por %p81, %p82
      %p84 = scmp.ne.s32.totalorder %s76, %s78
      %p85 = scmp.eq.s32.totalorder %s26, 1
      %p86 = por %p84, %p85
      %p87 = scmp.ne.s32.totalorder %s78, %s79
      %p88 = scmp.eq.s32.totalorder %s26, 0
      %p89 = por %p87, %p88
      %p90 = scmp.ne.s32.totalorder %s78, %s79
      %p91 = scmp.eq.s32.totalorder %s27, 1
      %p92 = por %p90, %p91
      %p94 = scmp.ne.s32.totalorder %s79, %s93
      %p95 = scmp.eq.s32.totalorder %s27, 0
      %p96 = por %p94, %p95
      %s98 = sadd.s32 %s97, 1
      %p101 = scmp.eq.s32.totalorder %s21, 1
      %p102 = scmp.ne.s32.totalorder %s97, %s99
      %p103 = scmp.eq.s32.totalorder %s21, 0
      %p104 = por %p102, %p103
      %p105 = scmp.ne.s32.totalorder %s97, %s99
      %p106 = scmp.eq.s32.totalorder %s26, 1
      %p107 = por %p105, %p106
      %p108 = scmp.ne.s32.totalorder %s99, %s100
      %p109 = scmp.eq.s32.totalorder %s26, 0
      %p110 = por %p108, %p109
      %p111 = scmp.ne.s32.totalorder %s99, %s100
      %p112 = scmp.eq.s32.totalorder %s27, 1
      %p113 = por %p111, %p112
      %p115 = scmp.ne.s32.totalorder %s100, %s114
      %p116 = scmp.eq.s32.totalorder %s27, 0
      %p117 = por %p115, %p116
      %s119 = sadd.s32 %s118, 1
      %p122 = scmp.eq.s32.totalorder %s21, 1
      %p123 = scmp.ne.s32.totalorder %s118, %s120
      %p124 = scmp.eq.s32.totalorder %s21, 0
      %p125 = por %p123, %p124
      %p126 = scmp.ne.s32.totalorder %s118, %s120
      %p127 = scmp.eq.s32.totalorder %s26, 1
      %p128 = por %p126, %p127
      %p129 = scmp.ne.s32.totalorder %s120, %s121
      %p130 = scmp.eq.s32.totalorder %s26, 0
      %p131 = por %p129, %p130
      %p132 = scmp.ne.s32.totalorder %s120, %s121
      %p133 = scmp.eq.s32.totalorder %s27, 1
      %p134 = por %p132, %p133
      %p136 = scmp.ne.s32.totalorder %s121, %s135
      %p137 = scmp.eq.s32.totalorder %s27, 0
      %p138 = por %p136, %p137
      %s140 = sadd.s32 %s139, 1
      %p143 = scmp.eq.s32.totalorder %s21, 1
      %p144 = scmp.ne.s32.totalorder %s139, %s141
      %p145 = scmp.eq.s32.totalorder %s21, 0
      %p146 = por %p144, %p145
      %p147 = scmp.ne.s32.totalorder %s139, %s141
      %p148 = scmp.eq.s32.totalorder %s26, 1
      %p149 = por %p147, %p148
      %p150 = scmp.ne.s32.totalorder %s141, %s142
      %p151 = scmp.eq.s32.totalorder %s26, 0
      %p152 = por %p150, %p151
      %p153 = scmp.ne.s32.totalorder %s141, %s142
      %p154 = scmp.eq.s32.totalorder %s27, 1
      %p155 = por %p153, %p154
      %p157 = scmp.ne.s32.totalorder %s142, %s156
      %p158 = scmp.eq.s32.totalorder %s27, 0
      %p159 = por %p157, %p158
      %s161 = sadd.s32 %s160, 1
      %p164 = scmp.eq.s32.totalorder %s21, 1
      %p165 = scmp.ne.s32.totalorder %s160, %s162
      %p166 = scmp.eq.s32.totalorder %s21, 0
      %p167 = por %p165, %p166
      %p168 = scmp.ne.s32.totalorder %s160, %s162
      %p169 = scmp.eq.s32.totalorder %s26, 1
      %p170 = por %p168, %p169
      %p171 = scmp.ne.s32.totalorder %s162, %s163
      %p172 = scmp.eq.s32.totalorder %s26, 0
      %p173 = por %p171, %p172
      %p174 = scmp.ne.s32.totalorder %s162, %s163
      %p175 = scmp.eq.s32.totalorder %s27, 1
      %p176 = por %p174, %p175
      %p178 = scmp.ne.s32.totalorder %s163, %s177
      %p179 = scmp.eq.s32.totalorder %s27, 0
      %p180 = por %p178, %p179
      %s182 = sadd.s32 %s181, 1
      %p185 = scmp.eq.s32.totalorder %s21, 1
      %p186 = scmp.ne.s32.totalorder %s181, %s183
      %p187 = scmp.eq.s32.totalorder %s21, 0
      %p188 = por %p186, %p187
      %p189 = scmp.ne.s32.totalorder %s181, %s183
      %p190 = scmp.eq.s32.totalorder %s26, 1
      %p191 = por %p189, %p190
      %p192 = scmp.ne.s32.totalorder %s183, %s184
      %p193 = scmp.eq.s32.totalorder %s26, 0
      %p194 = por %p192, %p193
      %p195 = scmp.ne.s32.totalorder %s183, %s184
      %p196 = scmp.eq.s32.totalorder %s27, 1
      %p197 = por %p195, %p196
      %p199 = scmp.ne.s32.totalorder %s184, %s198
      %p200 = scmp.eq.s32.totalorder %s27, 0
      %p201 = por %p199, %p200
      %s203 = sadd.s32 %s202, 1
      %p206 = scmp.eq.s32.totalorder %s21, 1
      %p207 = scmp.ne.s32.totalorder %s202, %s204
      %p208 = scmp.eq.s32.totalorder %s21, 0
      %p209 = por %p207, %p208
      %p210 = scmp.ne.s32.totalorder %s202, %s204
      %p211 = scmp.eq.s32.totalorder %s26, 1
      %p212 = por %p210, %p211
      %p213 = scmp.ne.s32.totalorder %s204, %s205
      %p214 = scmp.eq.s32.totalorder %s26, 0
      %p215 = por %p213, %p214
      %p216 = scmp.ne.s32.totalorder %s204, %s205
      %p217 = scmp.eq.s32.totalorder %s27, 1
      %p218 = por %p216, %p217
      %p220 = scmp.ne.s32.totalorder %s205, %s219
      %p221 = scmp.eq.s32.totalorder %s27, 0
      %p222 = por %p220, %p221
      %s224 = sadd.s32 %s223, 1
      %p227 = scmp.eq.s32.totalorder %s21, 1
      %p228 = scmp.ne.s32.totalorder %s223, %s225
      %p229 = scmp.eq.s32.totalorder %s21, 0
      %p230 = por %p228, %p229
      %p231 = scmp.ne.s32.totalorder %s223, %s225
      %p232 = scmp.eq.s32.totalorder %s26, 1
      %p233 = por %p231, %p232
      %p234 = scmp.ne.s32.totalorder %s225, %s226
      %p235 = scmp.eq.s32.totalorder %s26, 0
      %p236 = por %p234, %p235
      %p237 = scmp.ne.s32.totalorder %s225, %s226
      %p238 = scmp.eq.s32.totalorder %s27, 1
      %p239 = por %p237, %p238
      %p241 = scmp.ne.s32.totalorder %s226, %s240
      %p242 = scmp.eq.s32.totalorder %s27, 0
      %p243 = por %p241, %p242
      %s245 = sadd.s32 %s244, 1
      %p248 = scmp.eq.s32.totalorder %s21, 1
      %p249 = scmp.ne.s32.totalorder %s244, %s246
      %p250 = scmp.eq.s32.totalorder %s21, 0
      %p251 = por %p249, %p250
      %p252 = scmp.ne.s32.totalorder %s244, %s246
      %p253 = scmp.eq.s32.totalorder %s26, 1
      %p254 = por %p252, %p253
      %p255 = scmp.ne.s32.totalorder %s246, %s247
      %p256 = scmp.eq.s32.totalorder %s26, 0
      %p257 = por %p255, %p256
      %p258 = scmp.ne.s32.totalorder %s246, %s247
      %p259 = scmp.eq.s32.totalorder %s27, 1
      %p260 = por %p258, %p259
      %p262 = scmp.ne.s32.totalorder %s247, %s261
      %p263 = scmp.eq.s32.totalorder %s27, 0
      %p264 = por %p262, %p263
      %s265 = ssub.s32 %s21, %s28
      %p266 = scmp.eq.s32.totalorder %s265, 0
      %s268 = sadd.s32 %s267, 1
      %s269 = scalar_select %p266, %s267, %s268
      %p272 = pneg %p266
      %p273 = scmp.eq.s32.totalorder %s21, 1
      %p274 = por %p272, %p273
      %p275 = scmp.ne.s32.totalorder %s267, %s270
      %p276 = scmp.eq.s32.totalorder %s21, 0
      %p277 = por %p275, %p276
      %p278 = scmp.ne.s32.totalorder %s267, %s270
      %p279 = scmp.eq.s32.totalorder %s26, 1
      %p280 = por %p278, %p279
      %p281 = scmp.ne.s32.totalorder %s270, %s271
      %p282 = scmp.eq.s32.totalorder %s26, 0
      %p283 = por %p281, %p282
      %p284 = scmp.ne.s32.totalorder %s270, %s271
      %p285 = scmp.eq.s32.totalorder %s27, 1
      %p286 = por %p284, %p285
      %p288 = scmp.ne.s32.totalorder %s271, %s287
      %p289 = scmp.eq.s32.totalorder %s27, 0
      %p290 = por %p288, %p289
      %p291 = scmp.le.s32.totalorder 1, %s21
      %p292 = scmp.lt.s32.totalorder %s21, 3
      %p293 = pnand %p291, %p292
      %p294 = pneg %p293
      // Predicated region
      $region9: #{tpu_custom_call.1} parent=5 // pred_check
        _
      $region10: #{tpu_custom_call.1} parent=5 // pred_check_branch
        %296 = sbr.rel (%p293) target = $region12
      $region11: #{tpu_custom_call.1} parent=5 // pred_region
        %s297 = ssub.s32 %s21, 1
        // Predicated region
        $region13: #{tpu_custom_call.1} parent=11 // pred_check
          %p298 = pneg %p68
        $region14: #{tpu_custom_call.1} parent=11 // pred_check_branch
          %300 = sbr.rel (%p298) target = $region16
        $region15: #{tpu_custom_call.1} parent=11 // pred_region
          _
        $region16: #{tpu_custom_call.1} parent=11 // pred_fallthru
          _
        // Predicated region
        $region17: #{tpu_custom_call.1} parent=11 // pred_check
          %p301 = pneg %p89
        $region18: #{tpu_custom_call.1} parent=11 // pred_check_branch
          %303 = sbr.rel (%p301) target = $region20
        $region19: #{tpu_custom_call.1} parent=11 // pred_region
          _
        $region20: #{tpu_custom_call.1} parent=11 // pred_fallthru
          _
        // Predicated region
        $region21: #{tpu_custom_call.1} parent=11 // pred_check
          %p304 = pneg %p110
        $region22: #{tpu_custom_call.1} parent=11 // pred_check_branch
          %306 = sbr.rel (%p304) target = $region24
        $region23: #{tpu_custom_call.1} parent=11 // pred_region
          _
        $region24: #{tpu_custom_call.1} parent=11 // pred_fallthru
          _
        // Predicated region
        $region25: #{tpu_custom_call.1} parent=11 // pred_check
          %p307 = pneg %p131
        $region26: #{tpu_custom_call.1} parent=11 // pred_check_branch
          %309 = sbr.rel (%p307) target = $region28
        $region27: #{tpu_custom_call.1} parent=11 // pred_region
          _
        $region28: #{tpu_custom_call.1} parent=11 // pred_fallthru
          _
        // Predicated region
        $region29: #{tpu_custom_call.1} parent=11 // pred_check
          %p310 = pneg %p152
        $region30: #{tpu_custom_call.1} parent=11 // pred_check_branch
          %312 = sbr.rel (%p310) target = $region32
        $region31: #{tpu_custom_call.1} parent=11 // pred_region
          %314 = vsyncadd [#allocation4], 0
          %s315 = sshll.u32 %s5, 4
          %s316 = int_to_ptr.hbm [resolvable:$true] %s315
          %s317 = sshll.u32 [#allocation3], 4
          %s318 = int_to_ptr.vmem [resolvable:$true] %s317
          %323 = dma.hbm_to_vmem [thread:$0]  %s316, 256, %s318, [#allocation4], 64, 64, 4
        $region32: #{tpu_custom_call.1} parent=11 // pred_fallthru
          _
        // Predicated region
        $region33: #{tpu_custom_call.1} parent=11 // pred_check
          %p324 = pneg %p173
        $region34: #{tpu_custom_call.1} parent=11 // pred_check_branch
          %326 = sbr.rel (%p324) target = $region36
        $region35: #{tpu_custom_call.1} parent=11 // pred_region
          _
        $region36: #{tpu_custom_call.1} parent=11 // pred_fallthru
          _
        // Predicated region
        $region37: #{tpu_custom_call.1} parent=11 // pred_check
          %p327 = pneg %p194
        $region38: #{tpu_custom_call.1} parent=11 // pred_check_branch
          %329 = sbr.rel (%p327) target = $region40
        $region39: #{tpu_custom_call.1} parent=11 // pred_region
          _
        $region40: #{tpu_custom_call.1} parent=11 // pred_fallthru
          _
        // Predicated region
        $region41: #{tpu_custom_call.1} parent=11 // pred_check
          %p330 = pneg %p215
        $region42: #{tpu_custom_call.1} parent=11 // pred_check_branch
          %332 = sbr.rel (%p330) target = $region44
        $region43: #{tpu_custom_call.1} parent=11 // pred_region
          _
        $region44: #{tpu_custom_call.1} parent=11 // pred_fallthru
          _
        // Predicated region
        $region45: #{tpu_custom_call.1} parent=11 // pred_check
          %p333 = pneg %p236
        $region46: #{tpu_custom_call.1} parent=11 // pred_check_branch
          %335 = sbr.rel (%p333) target = $region48
        $region47: #{tpu_custom_call.1} parent=11 // pred_region
          _
        $region48: #{tpu_custom_call.1} parent=11 // pred_fallthru
          _
        // Predicated region
        $region49: #{tpu_custom_call.1} parent=11 // pred_check
          %p336 = pneg %p257
        $region50: #{tpu_custom_call.1} parent=11 // pred_check_branch
          %338 = sbr.rel (%p336) target = $region52
        $region51: #{tpu_custom_call.1} parent=11 // pred_region
          _
        $region52: #{tpu_custom_call.1} parent=11 // pred_fallthru
          _
      $region12: #{tpu_custom_call.1} parent=5 // pred_fallthru
        _
      %p339 = scmp.lt.s32.totalorder %s21, 2
      // Predicated region
      $region53: #{tpu_custom_call.1} parent=5 // pred_check
        %p340 = pneg %p339
      $region54: #{tpu_custom_call.1} parent=5 // pred_check_branch
        %342 = sbr.rel (%p340) target = $region56
      $region55: #{tpu_custom_call.1} parent=5 // pred_region
        // Predicated region
        $region57: #{tpu_custom_call.1} parent=55 // pred_check
          %p343 = pneg %p41
        $region58: #{tpu_custom_call.1} parent=55 // pred_check_branch
          %345 = sbr.rel (%p343) target = $region60
        $region59: #{tpu_custom_call.1} parent=55 // pred_region
          %s346 = sand.u32 %s31, 1
          %s347 = sand.u32 %s31, 1
          %s348 = smul.addr %s347, 12
          %s349 = scalar_lea.vmem [#allocation2], %s348
          %s350 = smul.addr %s21, 4
          %s351 = scalar_lea.vmem %s0, %s350
          // Predicated region
          $region61: #{tpu_custom_call.1} parent=59 // pred_check
            _
          $region62: #{tpu_custom_call.1} parent=59 // pred_check_branch
            %353 = sbr.rel (0) target = $region64
          $region63: #{tpu_custom_call.1} parent=59 // pred_region
            // Predicated region
            $region65: #{tpu_custom_call.1} parent=63 // pred_check
              _
            $region66: #{tpu_custom_call.1} parent=63 // pred_check_branch
              %355 = sbr.rel target = $region68
            $region67: #{tpu_custom_call.1} parent=63 // pred_region
              // Predicated region
              $region80: #{tpu_custom_call.1} parent=67 // pred_check
                _
              $region81: #{tpu_custom_call.1} parent=67 // pred_check_branch
                %375 = sbr.rel (0) target = $region83
              $region82: #{tpu_custom_call.1} parent=67 // pred_region
                loop: start=0, step=1, limit=1
                $region84: #{tpu_custom_call.1} parent=82 // loop_pre_header
                  _
                $region85: #{tpu_custom_call.1} parent=82 // loop_header
                  %s377 = sphi 0, %s381
                  %p378 = scmp.ge.s32.totalorder %s377, 1
                  %s382 = sphi %s351, %s351
                  %s383 = sphi %s349, %s349
                $region86: #{tpu_custom_call.1} parent=82 // loop_header_branch
                  %380 = sbr.rel (%p378) target = $region90
                $region87: #{tpu_custom_call.1} parent=82 // loop_body
                  _
                $region88: #{tpu_custom_call.1} parent=82 // loop_footer
                  %s381 = sadd.s32 1, %s377
                $region89: #{tpu_custom_call.1} parent=82 // loop_footer_branch
                  %376 = sbr.rel target = $region85
                $region90: #{tpu_custom_call.1} parent=82 // loop_exit
                  _
                %s385 = ssub.s32 16, 1
                loop: start=0, step=1, limit=1
                $region91: #{tpu_custom_call.1} parent=82 // loop_pre_header
                  _
                $region92: #{tpu_custom_call.1} parent=82 // loop_header
                  %s387 = sphi 0, %s391
                  %p388 = scmp.ge.s32.totalorder %s387, 1
                  %s392 = sphi %s351, %s351
                  %s393 = sphi %s349, %s349
                $region93: #{tpu_custom_call.1} parent=82 // loop_header_branch
                  %390 = sbr.rel (%p388) target = $region97
                $region94: #{tpu_custom_call.1} parent=82 // loop_body
                  %v394 = vld [vmem:[%s392] sm:%s385]
                  %395 = vst [vmem:[%s393] sm:%s385] %v394
                  %v396 = vld [vmem:[%s392 + $0x8] sm:%s385]
                  %397 = vst [vmem:[%s393 + $0x4] sm:%s385] %v396
                  %v398 = vld [vmem:[%s392 + $0x10] sm:%s385]
                  %399 = vst [vmem:[%s393 + $0x8] sm:%s385] %v398
                $region95: #{tpu_custom_call.1} parent=82 // loop_footer
                  %s391 = sadd.s32 1, %s387
                $region96: #{tpu_custom_call.1} parent=82 // loop_footer_branch
                  %386 = sbr.rel target = $region92
                $region97: #{tpu_custom_call.1} parent=82 // loop_exit
                  _
              $region83: #{tpu_custom_call.1} parent=67 // pred_fallthru
                _
            $region68: #{tpu_custom_call.1} parent=63 // pred_fallthru
              _
            // Predicated region
            $region69: #{tpu_custom_call.1} parent=63 // pred_check
              _
            $region70: #{tpu_custom_call.1} parent=63 // pred_check_branch
              %357 = sbr.rel (0) target = $region72
            $region71: #{tpu_custom_call.1} parent=63 // pred_region
              %s359 = ssub.s32 16, 1
              loop: start=0, step=1, limit=1
              $region73: #{tpu_custom_call.1} parent=71 // loop_pre_header
                _
              $region74: #{tpu_custom_call.1} parent=71 // loop_header
                %s361 = sphi 0, %s365
                %p362 = scmp.ge.s32.totalorder %s361, 1
                %s366 = sphi %s351, %s351
                %s367 = sphi %s349, %s349
              $region75: #{tpu_custom_call.1} parent=71 // loop_header_branch
                %364 = sbr.rel (%p362) target = $region79
              $region76: #{tpu_custom_call.1} parent=71 // loop_body
                %v368 = vld [vmem:[%s366] sm:%s359]
                %369 = vst [vmem:[%s367] sm:%s359] %v368
                %v370 = vld [vmem:[%s366 + $0x8] sm:%s359]
                %371 = vst [vmem:[%s367 + $0x4] sm:%s359] %v370
                %v372 = vld [vmem:[%s366 + $0x10] sm:%s359]
                %373 = vst [vmem:[%s367 + $0x8] sm:%s359] %v372
              $region77: #{tpu_custom_call.1} parent=71 // loop_footer
                %s365 = sadd.s32 1, %s361
              $region78: #{tpu_custom_call.1} parent=71 // loop_footer_branch
                %360 = sbr.rel target = $region74
              $region79: #{tpu_custom_call.1} parent=71 // loop_exit
                _
            $region72: #{tpu_custom_call.1} parent=63 // pred_fallthru
              _
          $region64: #{tpu_custom_call.1} parent=59 // pred_fallthru
            _
          %400 = vnop
        $region60: #{tpu_custom_call.1} parent=55 // pred_fallthru
          _
      $region56: #{tpu_custom_call.1} parent=5 // pred_fallthru
        _
      %p401 = scmp.le.s32.totalorder 1, %s21
      %p402 = scmp.lt.s32.totalorder %s21, 3
      %p403 = pnand %p401, %p402
      %p404 = pneg %p403
      // Predicated region
      $region98: #{tpu_custom_call.1} parent=5 // pred_check
        _
      $region99: #{tpu_custom_call.1} parent=5 // pred_check_branch
        %406 = sbr.rel (%p403) target = $region101
      $region100: #{tpu_custom_call.1} parent=5 // pred_region
        %s407 = ssub.s32 %s21, 1
        %s408 = sand.u32 %s34, 1
        %s409 = sand.u32 %s34, 1
        %s410 = smul.addr %s409, 12
        %s411 = scalar_lea.vmem [#allocation2], %s410
        // Predicated region
        $region102: #{tpu_custom_call.1} parent=100 // pred_check
          %p412 = pneg %p47
        $region103: #{tpu_custom_call.1} parent=100 // pred_check_branch
          %414 = sbr.rel (%p412) target = $region105
        $region104: #{tpu_custom_call.1} parent=100 // pred_region
          _
        $region105: #{tpu_custom_call.1} parent=100 // pred_fallthru
          _
        // Predicated region
        $region106: #{tpu_custom_call.1} parent=100 // pred_check
          %p415 = pneg %p152
        $region107: #{tpu_custom_call.1} parent=100 // pred_check_branch
          %417 = sbr.rel (%p415) target = $region109
        $region108: #{tpu_custom_call.1} parent=100 // pred_region
          %419 = dma.done [#allocation4], 256
        $region109: #{tpu_custom_call.1} parent=100 // pred_fallthru
          _
        %s420 = sand.u32 %s34, 1
        %s421 = sand.u32 %s34, 1
        %s422 = smul.addr %s421, 12
        %s423 = scalar_lea.vmem [#allocation2], %s422
        %p424 = pneg %p47
        %p425 = pneg %p44
        %p426 = pneg %p68
        %p427 = pneg %p65
        %p428 = pneg %p89
        %p429 = pneg %p86
        %p430 = pneg %p110
        %p431 = pneg %p107
        %p432 = pneg %p131
        %p433 = pneg %p128
        %p434 = pneg %p152
        %p435 = pneg %p149
        %p436 = pneg %p173
        %p437 = pneg %p170
        %p438 = pneg %p194
        %p439 = pneg %p191
        %p440 = pneg %p215
        %p441 = pneg %p212
        %p442 = pneg %p236
        %p443 = pneg %p233
        %p444 = pneg %p257
        %p445 = pneg %p254
        %p446 = pneg %p283
        %p447 = pneg %p280
        %s448 = sand.u32 %s270, 1
        %s449 = scalar_lea.sflag [#allocation5], %s448
        %s450 = sand.u32 %s270, 1
        %s451 = smul.addr %s450, 8
        %s452 = scalar_lea.vmem [#allocation6], %s451
        %v454 = vld [vmem:[%s411] sm:$0xf]
        %v455 = vld [vmem:[%s411 + $0x4] sm:$0xf]
        %v456 = vld [vmem:[%s411 + $0x8] sm:$0xf]
        %v457 = vld [vmem:[%s3] sm:$0xf]
        %v458 = vld [vmem:[%s3 + $0x4] sm:$0xf]
        %v459 = vld [vmem:[%s3 + $0x8] sm:$0xf]
        %v460 = vld [vmem:[%s3 + $0xc] sm:$0xf]
        %v461 = vld [vmem:[%s4] sm:$0x1]
        %v463 = vperm.slane %v461, 0
        %v468 = vunpack.c.l.b16 %v454
        %v469 = vunpack.c.l.b16 %v455
        %v470 = vunpack.c.l.b16 %v456
        %v471 = vpack.c.b16 %v469, %v468
        %v472 = vpack.c.b16 %v470, %v470
        %v477 = vunpack.c.l.b16 %v457
        %v478 = vunpack.c.l.b16 %v458
        %v479 = vunpack.c.l.b16 %v459
        %v480 = vunpack.c.l.b16 %v460
        %v481 = vpack.c.b16 %v478, %v477
        %v482 = vpack.c.b16 %v480, %v479
        %vm485 = vcmask 261120
        %v487 = vsel %vm485, %v471, 0
        %v490 = vsel %vm485, %v472, 0
        %492 = vmatpush.bf16.msra.mxu0 0
        %493 = vmatpush.bf16.msra.mxu0 0
        %494 = vmatpush.bf16.msra.mxu0 0
        %495 = vmatpush.bf16.msra.mxu0 0
        %496 = vmatpush.bf16.msra.mxu0 0
        %497 = vmatpush.bf16.msra.mxu0 0
        %498 = vmatpush.bf16.msra.mxu0 %v482
        %499 = vmatpush.bf16.msra.mxu0 %v481
        %500 = vmatmul.bf16.gmra.mxu0 %v487
        %v501 = vpop.f32.mrf.mxu0
        %v502 = vadd.f32 %v463, %v501
        %v503 = vpop.f32.mrf.mxu0
        %v504 = vadd.f32 %v463, %v503
        %505 = vmatmul.bf16.gmra.mxu0 %v490
        %v506 = vpop.f32.mrf.mxu0
        %v507 = vadd.f32 %v463, %v506
        %v508 = vpop.f32.mrf.mxu0
        %509 = vdwg.mxu0
        %v510 = vmul.f32 %v502, 0.5
        %v511 = vmul.f32 %v504, 0.5
        %v512 = vmul.f32 %v507, 0.5
        %v513 = vld [vmem:[%s1] sm:$0xf]
        %v514 = vld [vmem:[%s1 + $0x4] sm:$0xf]
        %v515 = vld [vmem:[%s1 + $0x8] sm:$0xf]
        %v516 = vld [vmem:[%s1 + $0xc] sm:$0xf]
        %v517 = vld [vmem:[%s2] sm:$0xf]
        %521 = vrot.lane.b32.xlu0 %v502, 96
        %v522 = vpop.permute.xlu0 %521
        %523 = vrot.lane.b32.xlu0 %v504, 96
        %v524 = vpop.permute.xlu0 %523
        %525 = vrot.lane.b32.xlu0 %v507, 96
        %v526 = vpop.permute.xlu0 %525
        %v530 = vmul.f32 %v510, %v522
        %v531 = vmul.f32 %v510, %v524
        %v532 = vmul.f32 %v510, %v526
        %v533 = vpack.c.bf16 %v531, %v530
        %v534 = vpack.c.bf16 %v532, %v532
        %v539 = vunpack.c.l.b16 %v513
        %v540 = vunpack.c.l.b16 %v514
        %v541 = vunpack.c.l.b16 %v515
        %v542 = vunpack.c.l.b16 %v516
        %v543 = vpack.c.b16 %v540, %v539
        %v544 = vpack.c.b16 %v542, %v541
        %v548 = vsel %vm485, %v533, 0
        %v551 = vsel %vm485, %v534, 0
        %553 = vmatpush.bf16.msra.mxu0 0
        %554 = vmatpush.bf16.msra.mxu0 0
        %555 = vmatpush.bf16.msra.mxu0 0
        %556 = vmatpush.bf16.msra.mxu0 0
        %557 = vmatpush.bf16.msra.mxu0 0
        %558 = vmatpush.bf16.msra.mxu0 0
        %559 = vmatpush.bf16.msra.mxu0 %v544
        %560 = vmatpush.bf16.msra.mxu0 %v543
        %561 = vmatmul.bf16.gmra.mxu0 %v548
        %v562 = vpop.f32.mrf.mxu0
        %v563 = vadd.f32 0.0, %v562
        %v564 = vpop.f32.mrf.mxu0
        %v565 = vadd.f32 0.0, %v564
        %566 = vmatmul.bf16.gmra.mxu0 %v551
        %v567 = vpop.f32.mrf.mxu0
        %v568 = vadd.f32 0.0, %v567
        %v569 = vpop.f32.mrf.mxu0
        %570 = vdwg.mxu0
        %vm571 = vcmask 64512
        %v572 = vsel %vm571, %v563, -inf
        %v573 = vsel %vm571, %v565, -inf
        %v574 = vsel %vm571, %v568, -inf
        %v575 = vmax.f32 %v572, %v573
        %v576 = vmax.f32 %v575, %v574
        %v577 = vsub.f32 %v563, %v576
        %v578 = vsub.f32 %v565, %v576
        %v579 = vsub.f32 %v568, %v576
        %v580 = vmul.f32 %v577, 1.442695
        %v581 = vpow.pop %v580
        %v582 = vmul.f32 %v578, 1.442695
        %v583 = vpow.pop %v582
        %v584 = vmul.f32 %v579, 1.442695
        %v585 = vpow.pop %v584
        %v586 = vsel %vm571, %v581, 0.0
        %v587 = vsel %vm571, %v583, 0.0
        %v588 = vadd.f32 %v586, %v587
        %v589 = vsel %vm571, %v585, 0.0
        %v590 = vadd.f32 %v588, %v589
        %v591 = vrcp.pop %v590
        %v592 = vmul.f32 %v581, %v591
        %v593 = vmul.f32 %v583, %v591
        %v594 = vmul.f32 %v585, %v591
        %v595 = vpack.c.bf16 %v593, %v592
        %v596 = vpack.c.bf16 %v594, %v594
        %v598 = vsel %vm571, %v595, 0
        %v601 = vsel %vm571, %v596, 0
        %vm603 = vcmask 1043456
        %v605 = vsel %vm603, %v517, 0
        %607 = vmatpush.bf16.msra.mxu0 0
        %608 = vmatpush.bf16.msra.mxu0 0
        %609 = vmatpush.bf16.msra.mxu0 0
        %610 = vmatpush.bf16.msra.mxu0 0
        %611 = vmatpush.bf16.msra.mxu0 0
        %612 = vmatpush.bf16.msra.mxu0 0
        %613 = vmatpush.bf16.msra.mxu0 0
        %614 = vmatpush.bf16.msra.mxu0 %v605
        %615 = vmatmul.bf16.gmra.mxu0 %v598
        %v616 = vpop.f32.mrf.mxu0
        %v617 = vadd.f32 0.0, %v616
        %v618 = vpop.f32.mrf.mxu0
        %v619 = vadd.f32 0.0, %v618
        %620 = vmatmul.bf16.gmra.mxu0 %v601
        %v621 = vpop.f32.mrf.mxu0
        %v622 = vadd.f32 0.0, %v621
        %v623 = vpop.f32.mrf.mxu0
        %624 = vdwg.mxu0
        %625 = vrot.lane.b32.xlu0 %v502, 64
        %v626 = vpop.permute.xlu0 %625
        %627 = vrot.lane.b32.xlu0 %v504, 64
        %v628 = vpop.permute.xlu0 %627
        %629 = vrot.lane.b32.xlu0 %v507, 64
        %v630 = vpop.permute.xlu0 %629
        %v634 = vmul.f32 %v617, %v626
        %v635 = vmul.f32 %v619, %v628
        %v636 = vmul.f32 %v622, %v630
        %v637 = vsel %vm485, %v634, 0.0
        %v638 = vsel %vm485, %v635, 0.0
        %v639 = vadd.f32 %v637, %v638
        %v640 = vsel %vm485, %v636, 0.0
        %v641 = vadd.f32 %v639, %v640
        %v642 = vmul.f32 %v511, %v522
        %v643 = vmul.f32 %v511, %v524
        %v644 = vmul.f32 %v511, %v526
        %v645 = vpack.c.bf16 %v643, %v642
        %v646 = vpack.c.bf16 %v644, %v644
        %v648 = vsel %vm485, %v645, 0
        %v651 = vsel %vm485, %v646, 0
        %653 = vmatpush.bf16.msra.mxu0 0
        %654 = vmatpush.bf16.msra.mxu0 0
        %655 = vmatpush.bf16.msra.mxu0 0
        %656 = vmatpush.bf16.msra.mxu0 0
        %657 = vmatpush.bf16.msra.mxu0 0
        %658 = vmatpush.bf16.msra.mxu0 0
        %659 = vmatpush.bf16.msra.mxu0 %v544
        %660 = vmatpush.bf16.msra.mxu0 %v543
        %661 = vmatmul.bf16.gmra.mxu0 %v648
        %v662 = vpop.f32.mrf.mxu0
        %v663 = vadd.f32 0.0, %v662
        %v664 = vpop.f32.mrf.mxu0
        %v665 = vadd.f32 0.0, %v664
        %666 = vmatmul.bf16.gmra.mxu0 %v651
        %v667 = vpop.f32.mrf.mxu0
        %v668 = vadd.f32 0.0, %v667
        %v669 = vpop.f32.mrf.mxu0
        %670 = vdwg.mxu0
        %v671 = vsel %vm571, %v663, -inf
        %v672 = vsel %vm571, %v665, -inf
        %v673 = vsel %vm571, %v668, -inf
        %v674 = vmax.f32 %v671, %v672
        %v675 = vmax.f32 %v674, %v673
        %v676 = vsub.f32 %v663, %v675
        %v677 = vsub.f32 %v665, %v675
        %v678 = vsub.f32 %v668, %v675
        %v679 = vmul.f32 %v676, 1.442695
        %v680 = vpow.pop %v679
        %v681 = vmul.f32 %v677, 1.442695
        %v682 = vpow.pop %v681
        %v683 = vmul.f32 %v678, 1.442695
        %v684 = vpow.pop %v683
        %v685 = vsel %vm571, %v680, 0.0
        %v686 = vsel %vm571, %v682, 0.0
        %v687 = vadd.f32 %v685, %v686
        %v688 = vsel %vm571, %v684, 0.0
        %v689 = vadd.f32 %v687, %v688
        %v690 = vrcp.pop %v689
        %v691 = vmul.f32 %v680, %v690
        %v692 = vmul.f32 %v682, %v690
        %v693 = vmul.f32 %v684, %v690
        %v694 = vpack.c.bf16 %v692, %v691
        %v695 = vpack.c.bf16 %v693, %v693
        %v697 = vsel %vm571, %v694, 0
        %v700 = vsel %vm571, %v695, 0
        %702 = vmatpush.bf16.msra.mxu0 0
        %703 = vmatpush.bf16.msra.mxu0 0
        %704 = vmatpush.bf16.msra.mxu0 0
        %705 = vmatpush.bf16.msra.mxu0 0
        %706 = vmatpush.bf16.msra.mxu0 0
        %707 = vmatpush.bf16.msra.mxu0 0
        %708 = vmatpush.bf16.msra.mxu0 0
        %709 = vmatpush.bf16.msra.mxu0 %v605
        %710 = vmatmul.bf16.gmra.mxu0 %v697
        %v711 = vpop.f32.mrf.mxu0
        %v712 = vadd.f32 0.0, %v711
        %v713 = vpop.f32.mrf.mxu0
        %v714 = vadd.f32 0.0, %v713
        %715 = vmatmul.bf16.gmra.mxu0 %v700
        %v716 = vpop.f32.mrf.mxu0
        %v717 = vadd.f32 0.0, %v716
        %v718 = vpop.f32.mrf.mxu0
        %719 = vdwg.mxu0
        %v720 = vmul.f32 %v712, %v626
        %v721 = vmul.f32 %v714, %v628
        %v722 = vmul.f32 %v717, %v630
        %v723 = vsel %vm485, %v720, 0.0
        %v724 = vsel %vm485, %v721, 0.0
        %v725 = vadd.f32 %v723, %v724
        %v726 = vsel %vm485, %v722, 0.0
        %v727 = vadd.f32 %v725, %v726
        %v728 = vmul.f32 %v512, %v522
        %v729 = vmul.f32 %v512, %v524
        %v730 = vmul.f32 %v512, %v526
        %v731 = vpack.c.bf16 %v729, %v728
        %v732 = vpack.c.bf16 %v730, %v730
        %v734 = vsel %vm485, %v731, 0
        %v737 = vsel %vm485, %v732, 0
        %739 = vmatpush.bf16.msra.mxu0 0
        %740 = vmatpush.bf16.msra.mxu0 0
        %741 = vmatpush.bf16.msra.mxu0 0
        %742 = vmatpush.bf16.msra.mxu0 0
        %743 = vmatpush.bf16.msra.mxu0 0
        %744 = vmatpush.bf16.msra.mxu0 0
        %745 = vmatpush.bf16.msra.mxu0 %v544
        %746 = vmatpush.bf16.msra.mxu0 %v543
        %747 = vmatmul.bf16.gmra.mxu0 %v734
        %v748 = vpop.f32.mrf.mxu0
        %v749 = vadd.f32 0.0, %v748
        %v750 = vpop.f32.mrf.mxu0
        %v751 = vadd.f32 0.0, %v750
        %752 = vmatmul.bf16.gmra.mxu0 %v737
        %v753 = vpop.f32.mrf.mxu0
        %v754 = vadd.f32 0.0, %v753
        %v755 = vpop.f32.mrf.mxu0
        %756 = vdwg.mxu0
        %v757 = vsel %vm571, %v749, -inf
        %v758 = vsel %vm571, %v751, -inf
        %v759 = vsel %vm571, %v754, -inf
        %v760 = vmax.f32 %v757, %v758
        %v761 = vmax.f32 %v760, %v759
        %v762 = vsub.f32 %v749, %v761
        %v763 = vsub.f32 %v751, %v761
        %v764 = vsub.f32 %v754, %v761
        %v765 = vmul.f32 %v762, 1.442695
        %v766 = vpow.pop %v765
        %v767 = vmul.f32 %v763, 1.442695
        %v768 = vpow.pop %v767
        %v769 = vmul.f32 %v764, 1.442695
        %v770 = vpow.pop %v769
        %v771 = vsel %vm571, %v766, 0.0
        %v772 = vsel %vm571, %v768, 0.0
        %v773 = vadd.f32 %v771, %v772
        %v774 = vsel %vm571, %v770, 0.0
        %v775 = vadd.f32 %v773, %v774
        %v776 = vrcp.pop %v775
        %v777 = vmul.f32 %v766, %v776
        %v778 = vmul.f32 %v768, %v776
        %v779 = vmul.f32 %v770, %v776
        %v780 = vpack.c.bf16 %v778, %v777
        %v781 = vpack.c.bf16 %v779, %v779
        %v783 = vsel %vm571, %v780, 0
        %v786 = vsel %vm571, %v781, 0
        %788 = vmatpush.bf16.msra.mxu0 0
        %789 = vmatpush.bf16.msra.mxu0 0
        %790 = vmatpush.bf16.msra.mxu0 0
        %791 = vmatpush.bf16.msra.mxu0 0
        %792 = vmatpush.bf16.msra.mxu0 0
        %793 = vmatpush.bf16.msra.mxu0 0
        %794 = vmatpush.bf16.msra.mxu0 0
        %795 = vmatpush.bf16.msra.mxu0 %v605
        %796 = vmatmul.bf16.gmra.mxu0 %v783
        %v797 = vpop.f32.mrf.mxu0
        %v798 = vadd.f32 0.0, %v797
        %v799 = vpop.f32.mrf.mxu0
        %v800 = vadd.f32 0.0, %v799
        %801 = vmatmul.bf16.gmra.mxu0 %v786
        %v802 = vpop.f32.mrf.mxu0
        %v803 = vadd.f32 0.0, %v802
        %v804 = vpop.f32.mrf.mxu0
        %805 = vdwg.mxu0
        %v806 = vmul.f32 %v798, %v626
        %v807 = vmul.f32 %v800, %v628
        %v808 = vmul.f32 %v803, %v630
        %v809 = vsel %vm485, %v806, 0.0
        %v810 = vsel %vm485, %v807, 0.0
        %v811 = vadd.f32 %v809, %v810
        %v812 = vsel %vm485, %v808, 0.0
        %v813 = vadd.f32 %v811, %v812
        %v814 = vpack.c.bf16 %v727, %v641
        %v815 = vpack.c.bf16 %v813, %v813
        %v816 = vld [vmem:[#allocation3] sm:$0xf]
        %v817 = vld [vmem:[#allocation3 + $0x4] sm:$0xf]
        %v818 = vld [vmem:[#allocation3 + $0x8] sm:$0xf]
        %v819 = vld [vmem:[#allocation3 + $0xc] sm:$0xf]
        %v820 = vld [vmem:[%s6] sm:$0x1]
        %v822 = vperm.slane %v820, 0
        %v828 = vunpack.c.l.b16 %v816
        %v829 = vunpack.c.l.b16 %v817
        %v830 = vunpack.c.l.b16 %v818
        %v831 = vunpack.c.l.b16 %v819
        %v832 = vpack.c.b16 %v829, %v828
        %v833 = vpack.c.b16 %v831, %v830
        %v837 = vsel %vm485, %v814, 0
        %v840 = vsel %vm485, %v815, 0
        %842 = vmatpush.bf16.msra.mxu0 0
        %843 = vmatpush.bf16.msra.mxu0 0
        %844 = vmatpush.bf16.msra.mxu0 0
        %845 = vmatpush.bf16.msra.mxu0 0
        %846 = vmatpush.bf16.msra.mxu0 0
        %847 = vmatpush.bf16.msra.mxu0 0
        %848 = vmatpush.bf16.msra.mxu0 %v833
        %849 = vmatpush.bf16.msra.mxu0 %v832
        %850 = vmatmul.bf16.gmra.mxu0 %v837
        %v851 = vpop.f32.mrf.mxu0
        %v852 = vadd.f32 %v822, %v851
        %v853 = vpop.f32.mrf.mxu0
        %v854 = vadd.f32 %v822, %v853
        %855 = vmatmul.bf16.gmra.mxu0 %v840
        %v856 = vpop.f32.mrf.mxu0
        %v857 = vadd.f32 %v822, %v856
        %v858 = vpop.f32.mrf.mxu0
        %859 = vdwg.mxu0
        %v860 = vld [vmem:[%s7] sm:$0xff]
        %v861 = vld [vmem:[%s7 + $0x8] sm:$0xff]
        %v862 = vld [vmem:[%s7 + $0x10] sm:$0xff]
        %v863 = vld [vmem:[%s7 + $0x18] sm:$0xff]
        %s864 = scalar_lea.vmem %s7, 32
        %v865 = vld [vmem:[%s864] sm:$0xff]
        %v866 = vld [vmem:[%s864 + $0x8] sm:$0xff]
        %v867 = vld [vmem:[%s864 + $0x10] sm:$0xff]
        %v868 = vld [vmem:[%s864 + $0x18] sm:$0xff]
        %v873 = vunpack.c.l.b16 %v865
        %v874 = vunpack.c.h.b16 %v865
        %v875 = vunpack.c.l.b16 %v866
        %v876 = vunpack.c.h.b16 %v866
        %v877 = vunpack.c.l.b16 %v867
        %v878 = vunpack.c.h.b16 %v867
        %v879 = vunpack.c.l.b16 %v868
        %v880 = vunpack.c.h.b16 %v868
        %v881 = vpack.c.b16 %v875, %v873
        %v882 = vpack.c.b16 %v876, %v874
        %v883 = vpack.c.b16 %v879, %v877
        %v884 = vpack.c.b16 %v880, %v878
        %v890 = vsel %vm485, %v455, 0
        %892 = vmatpush.bf16.msra.mxu0 0
        %893 = vmatpush.bf16.msra.mxu0 0
        %894 = vmatpush.bf16.msra.mxu0 0
        %895 = vmatpush.bf16.msra.mxu0 0
        %896 = vmatpush.bf16.msra.mxu0 0
        %897 = vmatpush.bf16.msra.mxu0 0
        %898 = vmatpush.bf16.msra.mxu0 %v883
        %899 = vmatpush.bf16.msra.mxu0 %v881
        %900 = vmatmul.bf16.gmra.mxu0 %v890
        %v901 = vpop.f32.mrf.mxu0
        %v902 = vadd.f32 0.0, %v901
        %v903 = vpop.f32.mrf.mxu0
        %904 = vdwg.mxu0
        %905 = vmatpush.bf16.msra.mxu0 0
        %906 = vmatpush.bf16.msra.mxu0 0
        %907 = vmatpush.bf16.msra.mxu0 0
        %908 = vmatpush.bf16.msra.mxu0 0
        %909 = vmatpush.bf16.msra.mxu0 0
        %910 = vmatpush.bf16.msra.mxu0 0
        %911 = vmatpush.bf16.msra.mxu0 %v884
        %912 = vmatpush.bf16.msra.mxu0 %v882
        %913 = vmatmul.bf16.gmra.mxu0 %v890
        %v914 = vpop.f32.mrf.mxu0
        %v915 = vadd.f32 0.0, %v914
        %v916 = vpop.f32.mrf.mxu0
        %917 = vdwg.mxu0
        %v922 = vunpack.c.l.b16 %v860
        %v923 = vunpack.c.h.b16 %v860
        %v924 = vunpack.c.l.b16 %v861
        %v925 = vunpack.c.h.b16 %v861
        %v926 = vunpack.c.l.b16 %v862
        %v927 = vunpack.c.h.b16 %v862
        %v928 = vunpack.c.l.b16 %v863
        %v929 = vunpack.c.h.b16 %v863
        %v930 = vpack.c.b16 %v924, %v922
        %v931 = vpack.c.b16 %v925, %v923
        %v932 = vpack.c.b16 %v928, %v926
        %v933 = vpack.c.b16 %v929, %v927
        %v939 = vsel %vm485, %v454, 0
        %941 = vmatpush.bf16.msra.mxu0 0
        %942 = vmatpush.bf16.msra.mxu0 0
        %943 = vmatpush.bf16.msra.mxu0 0
        %944 = vmatpush.bf16.msra.mxu0 0
        %945 = vmatpush.bf16.msra.mxu0 0
        %946 = vmatpush.bf16.msra.mxu0 0
        %947 = vmatpush.bf16.msra.mxu0 %v932
        %948 = vmatpush.bf16.msra.mxu0 %v930
        %949 = vmatmul.bf16.gmra.mxu0 %v939
        %v950 = vpop.f32.mrf.mxu0
        %v951 = vadd.f32 %v902, %v950
        %v952 = vpop.f32.mrf.mxu0
        %953 = vdwg.mxu0
        %954 = vmatpush.bf16.msra.mxu0 0
        %955 = vmatpush.bf16.msra.mxu0 0
        %956 = vmatpush.bf16.msra.mxu0 0
        %957 = vmatpush.bf16.msra.mxu0 0
        %958 = vmatpush.bf16.msra.mxu0 0
        %959 = vmatpush.bf16.msra.mxu0 0
        %960 = vmatpush.bf16.msra.mxu0 %v933
        %961 = vmatpush.bf16.msra.mxu0 %v931
        %962 = vmatmul.bf16.gmra.mxu0 %v939
        %v963 = vpop.f32.mrf.mxu0
        %v964 = vadd.f32 %v915, %v963
        %v965 = vpop.f32.mrf.mxu0
        %966 = vdwg.mxu0
        %s967 = scalar_lea.vmem %s7, 64
        %v968 = vld [vmem:[%s967] sm:$0xff]
        %v969 = vld [vmem:[%s967 + $0x8] sm:$0xff]
        %v970 = vld [vmem:[%s967 + $0x10] sm:$0xff]
        %v971 = vld [vmem:[%s967 + $0x18] sm:$0xff]
        %v976 = vunpack.c.l.b16 %v968
        %v977 = vunpack.c.h.b16 %v968
        %v978 = vunpack.c.l.b16 %v969
        %v979 = vunpack.c.h.b16 %v969
        %v980 = vunpack.c.l.b16 %v970
        %v981 = vunpack.c.h.b16 %v970
        %v982 = vunpack.c.l.b16 %v971
        %v983 = vunpack.c.h.b16 %v971
        %v984 = vpack.c.b16 %v978, %v976
        %v985 = vpack.c.b16 %v979, %v977
        %v986 = vpack.c.b16 %v982, %v980
        %v987 = vpack.c.b16 %v983, %v981
        %v993 = vsel %vm485, %v456, 0
        %995 = vmatpush.bf16.msra.mxu0 0
        %996 = vmatpush.bf16.msra.mxu0 0
        %997 = vmatpush.bf16.msra.mxu0 0
        %998 = vmatpush.bf16.msra.mxu0 0
        %999 = vmatpush.bf16.msra.mxu0 0
        %1000 = vmatpush.bf16.msra.mxu0 0
        %1001 = vmatpush.bf16.msra.mxu0 %v986
        %1002 = vmatpush.bf16.msra.mxu0 %v984
        %1003 = vmatmul.bf16.gmra.mxu0 %v993
        %v1004 = vpop.f32.mrf.mxu0
        %v1005 = vadd.f32 0.0, %v1004
        %v1006 = vpop.f32.mrf.mxu0
        %1007 = vdwg.mxu0
        %1008 = vmatpush.bf16.msra.mxu0 0
        %1009 = vmatpush.bf16.msra.mxu0 0
        %1010 = vmatpush.bf16.msra.mxu0 0
        %1011 = vmatpush.bf16.msra.mxu0 0
        %1012 = vmatpush.bf16.msra.mxu0 0
        %1013 = vmatpush.bf16.msra.mxu0 0
        %1014 = vmatpush.bf16.msra.mxu0 %v987
        %1015 = vmatpush.bf16.msra.mxu0 %v985
        %1016 = vmatmul.bf16.gmra.mxu0 %v993
        %v1017 = vpop.f32.mrf.mxu0
        %v1018 = vadd.f32 0.0, %v1017
        %v1019 = vpop.f32.mrf.mxu0
        %1020 = vdwg.mxu0
        %v1021 = vadd.f32 %v951, %v1005
        %v1022 = vadd.f32 %v964, %v1018
        %v1023 = vld [vmem:[%s8] sm:$0x3]
        %v1025 = vperm.slane %v1023, 0
        %v1026 = vperm.slane %v1023, 1
        %v1029 = vadd.f32 %v1021, %v1025
        %v1030 = vadd.f32 %v1022, %v1026
        %v1031 = vmax.f32 %v1029, 0.0
        %v1032 = vmax.f32 %v1030, 0.0
        %v1033 = vpack.c.bf16 %v1031, %v1031
        %v1034 = vpack.c.bf16 %v1032, %v1032
        %v1035 = vld [vmem:[%s9] sm:$0xf]
        %v1036 = vld [vmem:[%s9 + $0x4] sm:$0xf]
        %v1037 = vld [vmem:[%s9 + $0x8] sm:$0xf]
        %v1038 = vld [vmem:[%s9 + $0xc] sm:$0xf]
        %v1039 = vld [vmem:[%s9 + $0x10] sm:$0xf]
        %v1040 = vld [vmem:[%s9 + $0x14] sm:$0xf]
        %v1041 = vld [vmem:[%s9 + $0x18] sm:$0xf]
        %v1042 = vld [vmem:[%s9 + $0x1c] sm:$0xf]
        %v1043 = vld [vmem:[%s9 + $0x20] sm:$0xf]
        %v1044 = vld [vmem:[%s9 + $0x24] sm:$0xf]
        %v1045 = vld [vmem:[%s9 + $0x28] sm:$0xf]
        %v1046 = vld [vmem:[%s9 + $0x2c] sm:$0xf]
        %v1047 = vld [vmem:[%s9 + $0x30] sm:$0xf]
        %v1048 = vld [vmem:[%s9 + $0x34] sm:$0xf]
        %v1049 = vld [vmem:[%s9 + $0x38] sm:$0xf]
        %v1050 = vld [vmem:[%s9 + $0x3c] sm:$0xf]
        %v1051 = vld [vmem:[%s9 + $0x40] sm:$0xf]
        %v1052 = vld [vmem:[%s9 + $0x44] sm:$0xf]
        %v1053 = vld [vmem:[%s9 + $0x48] sm:$0xf]
        %v1054 = vld [vmem:[%s9 + $0x4c] sm:$0xf]
        %v1055 = vld [vmem:[%s9 + $0x50] sm:$0xf]
        %v1056 = vld [vmem:[%s9 + $0x54] sm:$0xf]
        %v1057 = vld [vmem:[%s9 + $0x58] sm:$0xf]
        %v1058 = vld [vmem:[%s9 + $0x5c] sm:$0xf]
        %v1059 = vld [vmem:[%s9 + $0x60] sm:$0xf]
        %v1060 = vld [vmem:[%s9 + $0x64] sm:$0xf]
        %v1061 = vld [vmem:[%s9 + $0x68] sm:$0xf]
        %v1062 = vld [vmem:[%s9 + $0x6c] sm:$0xf]
        %v1063 = vld [vmem:[%s9 + $0x70] sm:$0xf]
        %v1064 = vld [vmem:[%s9 + $0x74] sm:$0xf]
        %v1065 = vld [vmem:[%s9 + $0x78] sm:$0xf]
        %v1066 = vld [vmem:[%s9 + $0x7c] sm:$0xf]
        %v1067 = vld [vmem:[%s10] sm:$0x1]
        %v1069 = vperm.slane %v1067, 0
        %v1103 = vunpack.c.l.b16 %v1035
        %v1104 = vunpack.c.l.b16 %v1036
        %v1105 = vunpack.c.l.b16 %v1037
        %v1106 = vunpack.c.l.b16 %v1038
        %v1107 = vunpack.c.l.b16 %v1039
        %v1108 = vunpack.c.l.b16 %v1040
        %v1109 = vunpack.c.l.b16 %v1041
        %v1110 = vunpack.c.l.b16 %v1042
        %v1111 = vunpack.c.l.b16 %v1043
        %v1112 = vunpack.c.l.b16 %v1044
        %v1113 = vunpack.c.l.b16 %v1045
        %v1114 = vunpack.c.l.b16 %v1046
        %v1115 = vunpack.c.l.b16 %v1047
        %v1116 = vunpack.c.l.b16 %v1048
        %v1117 = vunpack.c.l.b16 %v1049
        %v1118 = vunpack.c.l.b16 %v1050
        %v1119 = vunpack.c.l.b16 %v1051
        %v1120 = vunpack.c.l.b16 %v1052
        %v1121 = vunpack.c.l.b16 %v1053
        %v1122 = vunpack.c.l.b16 %v1054
        %v1123 = vunpack.c.l.b16 %v1055
        %v1124 = vunpack.c.l.b16 %v1056
        %v1125 = vunpack.c.l.b16 %v1057
        %v1126 = vunpack.c.l.b16 %v1058
        %v1127 = vunpack.c.l.b16 %v1059
        %v1128 = vunpack.c.l.b16 %v1060
        %v1129 = vunpack.c.l.b16 %v1061
        %v1130 = vunpack.c.l.b16 %v1062
        %v1131 = vunpack.c.l.b16 %v1063
        %v1132 = vunpack.c.l.b16 %v1064
        %v1133 = vunpack.c.l.b16 %v1065
        %v1134 = vunpack.c.l.b16 %v1066
        %v1135 = vpack.c.b16 %v1104, %v1103
        %v1136 = vpack.c.b16 %v1106, %v1105
        %v1137 = vpack.c.b16 %v1108, %v1107
        %v1138 = vpack.c.b16 %v1110, %v1109
        %v1139 = vpack.c.b16 %v1112, %v1111
        %v1140 = vpack.c.b16 %v1114, %v1113
        %v1141 = vpack.c.b16 %v1116, %v1115
        %v1142 = vpack.c.b16 %v1118, %v1117
        %v1143 = vpack.c.b16 %v1120, %v1119
        %v1144 = vpack.c.b16 %v1122, %v1121
        %v1145 = vpack.c.b16 %v1124, %v1123
        %v1146 = vpack.c.b16 %v1126, %v1125
        %v1147 = vpack.c.b16 %v1128, %v1127
        %v1148 = vpack.c.b16 %v1130, %v1129
        %v1149 = vpack.c.b16 %v1132, %v1131
        %v1150 = vpack.c.b16 %v1134, %v1133
        %1167 = vmatpush.bf16.msra.mxu0 %v1142
        %1168 = vmatpush.bf16.msra.mxu0 %v1141
        %1169 = vmatpush.bf16.msra.mxu0 %v1140
        %1170 = vmatpush.bf16.msra.mxu0 %v1139
        %1171 = vmatpush.bf16.msra.mxu0 %v1138
        %1172 = vmatpush.bf16.msra.mxu0 %v1137
        %1173 = vmatpush.bf16.msra.mxu0 %v1136
        %1174 = vmatpush.bf16.msra.mxu0 %v1135
        %1175 = vmatmul.bf16.gmra.mxu0 %v1033
        %v1176 = vpop.f32.mrf.mxu0
        %v1177 = vadd.f32 %v1069, %v1176
        %v1178 = vpop.f32.mrf.mxu0
        %1179 = vdwg.mxu0
        %1180 = vmatpush.bf16.msra.mxu0 %v1150
        %1181 = vmatpush.bf16.msra.mxu0 %v1149
        %1182 = vmatpush.bf16.msra.mxu0 %v1148
        %1183 = vmatpush.bf16.msra.mxu0 %v1147
        %1184 = vmatpush.bf16.msra.mxu0 %v1146
        %1185 = vmatpush.bf16.msra.mxu0 %v1145
        %1186 = vmatpush.bf16.msra.mxu0 %v1144
        %1187 = vmatpush.bf16.msra.mxu0 %v1143
        %1188 = vmatmul.bf16.gmra.mxu0 %v1034
        %v1189 = vpop.f32.mrf.mxu0
        %v1190 = vadd.f32 %v1177, %v1189
        %v1191 = vpop.f32.mrf.mxu0
        %1192 = vdwg.mxu0
        %vm1193 = vcmask 23552
        %v1194 = vsel %vm1193, %v1190, -inf
        %1195 = vmax.xlane.f32.xlu0 %v1194
        %v1196 = vpop.xlane.xlu0 %1195
        %v1197 = vsub.f32 %v1190, %v1196
        %v1198 = vmul.f32 %v1197, 1.442695
        %v1199 = vpow.pop %v1198
        %v1200 = vsel %vm1193, %v1199, 0.0
        %1201 = vadd.xlane.f32.xlu0 %v1200
        %v1202 = vpop.xlane.xlu0 %1201
        %v1203 = vrcp.pop %v1202
        %v1204 = vmul.f32 %v1202, %v1203
        %v1205 = vsub.f32 1.0, %v1204
        %v1206 = vmul.f32 %v1203, %v1205
        %v1207 = vadd.f32 %v1203, %v1206
        %vm1208 = vweird.f32 %v1202
        %vm1209 = vweird.f32 %v1203
        %vm1210 = vmor %vm1208, %vm1209
        %v1211 = vsel %vm1210, %v1203, %v1207
        %v1212 = vand.u32 2147483647, %v1202
        %vm1213 = vcmp.eq.f32.partialorder %v1212, 8.507059e+37
        %v1214 = vand.u32 %v1202, 2147483648
        %v1215 = vor.u32 1.1754944e-38, %v1214
        %v1216 = vsel %vm1213, %v1215, %v1211
        %v1217 = vmul.f32 %v1199, %v1216
        %1219 = vset.pattern.permute.xlu0 0
        %1220 = vperm.xlu0 %1219, %v1217
        %v1221 = vpop.permute.xlu0 %1220
        %v1223 = vmul.f32 %v1221, %v852
        %1224 = vset.pattern.permute.xlu0 1
        %1225 = vperm.xlu0 %1224, %v1217
        %v1226 = vpop.permute.xlu0 %1225
        %v1228 = vmul.f32 %v1226, %v854
        %v1229 = vadd.f32 %v1223, %v1228
        %1230 = vset.pattern.permute.xlu0 2
        %1231 = vperm.xlu0 %1230, %v1217
        %v1232 = vpop.permute.xlu0 %1231
        %v1234 = vmul.f32 %v1232, %v857
        %v1235 = vadd.f32 %v1229, %v1234
        %1236 = vst.msk [vmem:[%s452] sm:$0xff] %vm485, %v1235
        %s1237 = sand.u32 %s270, 1
        %s1238 = scalar_lea.sflag [#allocation5], %s1237
        %s1239 = sand.u32 %s270, 1
        %s1240 = smul.addr %s1239, 8
        %s1241 = scalar_lea.vmem [#allocation6], %s1240
        // Predicated region
        $region110: #{tpu_custom_call.1} parent=100 // pred_check
          %p1242 = pneg %p280
        $region111: #{tpu_custom_call.1} parent=100 // pred_check_branch
          %1244 = sbr.rel (%p1242) target = $region113
        $region112: #{tpu_custom_call.1} parent=100 // pred_region
          %1246 = vsyncadd %s1238, 0
          %s1247 = smul.addr %s26, 8
          %s1248 = scalar_lea.hbm %s11, %s1247
          %s1250 = sshll.u32 %s1241, 4
          %s1251 = int_to_ptr.vmem [resolvable:$true] %s1250
          %s1252 = sshll.u32 %s1248, 4
          %s1253 = int_to_ptr.hbm [resolvable:$true] %s1252
          %1255 = dma.vmem_to_hbm [thread:$0]  %s1251, 128, %s1253, %s1238
        $region113: #{tpu_custom_call.1} parent=100 // pred_fallthru
          _
      $region101: #{tpu_custom_call.1} parent=5 // pred_fallthru
        _
      %p1256 = scmp.le.s32.totalorder 2, %s21
      // Predicated region
      $region114: #{tpu_custom_call.1} parent=5 // pred_check
        %p1257 = pneg %p1256
      $region115: #{tpu_custom_call.1} parent=5 // pred_check_branch
        %1259 = sbr.rel (%p1257) target = $region117
      $region116: #{tpu_custom_call.1} parent=5 // pred_region
        %s1260 = ssub.s32 %s21, 2
        // Predicated region
        $region118: #{tpu_custom_call.1} parent=116 // pred_check
          %p1261 = pneg %p286
        $region119: #{tpu_custom_call.1} parent=116 // pred_check_branch
          %1263 = sbr.rel (%p1261) target = $region121
        $region120: #{tpu_custom_call.1} parent=116 // pred_region
          %s1264 = sand.u32 %s271, 1
          %s1265 = scalar_lea.sflag [#allocation5], %s1264
          %s1266 = sand.u32 %s271, 1
          %s1267 = smul.addr %s1266, 8
          %s1268 = scalar_lea.vmem [#allocation6], %s1267
          %1270 = dma.done %s1265, 128
        $region121: #{tpu_custom_call.1} parent=116 // pred_fallthru
          _
      $region117: #{tpu_custom_call.1} parent=5 // pred_fallthru
        _
    $region6: #{tpu_custom_call.1} parent=1 // loop_footer
      %s25 = sadd.s32 1, %s21
    $region7: #{tpu_custom_call.1} parent=1 // loop_footer_branch
      %20 = sbr.rel target = $region3
    $region8: #{tpu_custom_call.1} parent=1 // loop_exit
      _
    %1271 = vsyncpa [#allocation4], 1
    %s1272 = scalar_lea.sflag [#allocation4], 1
    %1273 = vsyncpa %s1272, 1
    %1274 = vsyncpa [#allocation5], 1
    %s1275 = scalar_lea.sflag [#allocation5], 1
    %1276 = vsyncpa %s1275, 1

</llo_original>
